<compile_context>
chip_gen: v5e
topology: v5e:2x2
jax: 0.10.0
libtpu: 0.0.40
codegen_flags: <defaults>
</compile_context>

<pallas_src>
import math
import numpy as np
import jax
import jax.numpy as jnp
from jax.experimental import pallas as pl
from jax.experimental.pallas import tpu as pltpu


def _round_up(x, m):
    return ((x + m - 1) // m) * m


# ---------------------------------------------------------------------------
# Trace-time (NumPy) operator construction — no device scatters in the graph.
# ---------------------------------------------------------------------------
def _bilinear_matrix_np(out_size, in_size, scale=None):
    """(out_size, in_size) bilinear matrix, PyTorch align_corners=False.
    scale given  -> F.interpolate(scale_factor=p) coordinate rule (1/p).
    scale None   -> F.interpolate(size=...) coordinate rule (in/out)."""
    j = np.arange(out_size, dtype=np.float64)
    if scale is not None:
        src = (j + 0.5) / float(scale) - 0.5
    else:
        src = (j + 0.5) * (in_size / out_size) - 0.5
    src = np.maximum(src, 0.0)
    i0 = np.minimum(np.floor(src).astype(np.int64), in_size - 1)
    i1 = np.minimum(i0 + 1, in_size - 1)
    lam = src - i0
    m = np.zeros((out_size, in_size), dtype=np.float64)
    m[np.arange(out_size), i0] += 1.0 - lam
    m[np.arange(out_size), i1] += lam
    return m


def _branch_operators(H, W, p, cin_pad):
    """Static data for one branch (p=None -> scale 1.0):
      kdownT (HW, Sp) : fused kron bilinear-downsample, row-major flattening,
                        zero-padded to Sp = round_up(Hp*Wp, 128) lanes.
      kupT   (Sp, HW) : bilinear upsample back to (H, W) (zero pad rows).
      shifts [9]      : static pltpu.roll amounts, tapview[p] = xd[p + d],
                        d = (ky-1)*Wp + (kx-1)  ->  shift = (-d) % Sp.
      mask (9*cin_pad, Sp): zero-padding border mask (and padded-lane mask)."""
    HW = H * W
    if p is None:
        Hp, Wp = H, W
        Sp = HW                          # 256 for 16x16 (already lane-aligned)
        kdownT = kupT = None
    else:
        Hp, Wp = int(math.floor(H * p)), int(math.floor(W * p))
        Sp = _round_up(Hp * Wp, 128)
        A = _bilinear_matrix_np(Hp, H, scale=p)
        B = _bilinear_matrix_np(Wp, W, scale=p)
        kdownT = np.zeros((HW, Sp), np.float32)
        kdownT[:, :Hp * Wp] = np.kron(A, B).T
        UH = _bilinear_matrix_np(H, Hp)
        UW = _bilinear_matrix_np(W, Wp)
        kupT = np.zeros((Sp, HW), np.float32)
        kupT[:Hp * Wp, :] = np.kron(UH, UW).T
    pidx = np.arange(Sp)
    row = pidx // Wp
    col = pidx % Wp
    shifts, mask_rows = [], []
    for ky in range(3):
        for kx in range(3):
            d = (ky - 1) * Wp + (kx - 1)
            shifts.append(int((-d) % Sp))
            valid = ((pidx < Hp * Wp)
                     & (row + ky - 1 >= 0) & (row + ky - 1 < Hp)
                     & (col + kx - 1 >= 0) & (col + kx - 1 < Wp))
            mask_rows.append(np.broadcast_to(valid.astype(np.float32),
                                             (cin_pad, Sp)))
    mask = np.concatenate(mask_rows, axis=0)          # (9*cin_pad, Sp)
    return dict(resize=p is not None, Sp=Sp, shifts=shifts,
                kdownT=kdownT, kupT=kupT, mask=mask)


# ---------------------------------------------------------------------------
# MSC_consistency.forward — one fused Pallas kernel
# ---------------------------------------------------------------------------
def msc_consistency_forward(x, weight, bias, scales=(0.5, 0.75), mirroring=True):
    """x:(N,Cin,H,W)  weight:(Cout,Cin,3,3) OIHW  bias:(Cout,)
    Returns the same list of (N,Cout,H,W) tensors as MSC_consistency.forward."""
    N, Cin, H, W = x.shape
    HW = H * W
    Cout = weight.shape[0]
    cin_pad = _round_up(Cin, 8)          # full sublane group -> aligned concat
    CoutT = 2 * Cout if mirroring else Cout

    if scales is not None and not isinstance(scales, (list, tuple)):
        # TODO(synk): reference samples np.random.uniform scales on the host
        # (non-deterministic per call); not replicated here.
        raise NotImplementedError("random-scale branch not implemented")

    # weights -> (CoutT, 9*cin_pad), K index = (ky*3+kx)*cin_pad + cin.
    def pack(wt):
        wt = jnp.transpose(wt, (0, 2, 3, 1))                  # (Cout,ky,kx,Cin)
        wt = jnp.pad(wt, ((0, 0), (0, 0), (0, 0), (0, cin_pad - Cin)))
        return wt.reshape(Cout, 9 * cin_pad)
    w_mat = pack(weight)
    if mirroring:
        w_mat = jnp.concatenate([w_mat, pack(weight[:, :, :, ::-1])], axis=0)
        bias = jnp.concatenate([bias, bias], axis=0)
    bias_col = bias.reshape(CoutT, 1)

    x_flat = jnp.pad(x, ((0, 0), (0, cin_pad - Cin), (0, 0), (0, 0))
                     ).reshape(N, cin_pad, HW)

    scale_list = list(scales) if scales is not None else []
    branches = [_branch_operators(H, W, p, cin_pad) for p in [None] + scale_list]

    operands = [x_flat, w_mat, bias_col]
    in_specs = [pl.BlockSpec((1, cin_pad, HW), lambda n: (n, 0, 0)),
                pl.BlockSpec((CoutT, 9 * cin_pad), lambda n: (0, 0)),
                pl.BlockSpec((CoutT, 1), lambda n: (0, 0))]
    full2d = lambda a: pl.BlockSpec(a.shape, lambda n: (0, 0))
    for br in branches:
        arrs = ((br["kdownT"], br["kupT"], br["mask"]) if br["resize"]
                else (br["mask"],))
        for arr in arrs:
            a = jnp.asarray(arr)
            operands.append(a)
            in_specs.append(full2d(a))

    per_branch = 2 if mirroring else 1
    n_out = per_branch * len(branches)

    def kernel(*refs):
        x_ref, w_ref, b_ref = refs[:3]
        pos = 3
        br_refs = []
        for br in branches:
            if br["resize"]:
                br_refs.append(refs[pos:pos + 3]); pos += 3
            else:
                br_refs.append((None, None, refs[pos])); pos += 1
        out_refs = refs[pos:]

        x_img = x_ref[0]                               # (cin_pad, HW) f32
        w = w_ref[...]
        b = b_ref[...]
        oi = 0
        for br, (kd_ref, ku_ref, m_ref) in zip(branches, br_refs):
            # bilinear downsample fused into ONE lane-dense matmul (skip @1.0)
            xd = x_img if kd_ref is None else jnp.dot(
                x_img, kd_ref[...], preferred_element_type=jnp.float32)
            # in-kernel im2col: 9 static XLU lane-rotations + one border mask
            pieces = [xd if s == 0 else pltpu.roll(xd, s, axis=1)
                      for s in br["shifts"]]
            patches = jnp.concatenate(pieces, axis=0) * m_ref[...]  # (9*cp, Sp)
            # single MXU conv contraction over taps+channels (K = 9*cin_pad)
            acc = jnp.dot(w, patches, preferred_element_type=jnp.float32)
            if ku_ref is not None:                     # upsample back to (H,W)
                acc = jnp.dot(acc, ku_ref[...],
                              preferred_element_type=jnp.float32)
            acc = acc + b
            out_refs[oi][0] = acc[:Cout].astype(out_refs[oi].dtype)
            oi += 1
            if mirroring:
                out_refs[oi][0] = acc[Cout:CoutT].astype(out_refs[oi].dtype)
                oi += 1

    outs = pl.pallas_call(
        kernel,
        out_shape=tuple(jax.ShapeDtypeStruct((N, Cout, HW), x.dtype)
                        for _ in range(n_out)),
        grid=(N,),
        in_specs=in_specs,
        out_specs=[pl.BlockSpec((1, Cout, HW), lambda n: (n, 0, 0))
                   for _ in range(n_out)],
        compiler_params=pltpu.CompilerParams(
            dimension_semantics=("parallel",)),   # v7x: one image per TC
    )(*operands)
    return [o.reshape(N, Cout, H, W) for o in outs]


# ---------------------------------------------------------------------------
# Float64 NumPy reference (same bilinear convention, literal flips/resizes)
# ---------------------------------------------------------------------------
def _reference_forward_np(x, weight, bias, scales, mirroring):
    x = np.asarray(x, np.float64)
    w = np.asarray(weight, np.float64)
    b = np.asarray(bias, np.float64)
    N, Cin, H, W = x.shape
    Cout = w.shape[0]

    def conv(z):
        n, c, h, ww = z.shape
        zp = np.zeros((n, c, h + 2, ww + 2)); zp[:, :, 1:-1, 1:-1] = z
        out = np.tile(b.reshape(1, Cout, 1, 1), (n, 1, h, ww))
        for ky in range(3):
            for kx in range(3):
                out += np.einsum('oc,nchw->nohw', w[:, :, ky, kx],
                                 zp[:, :, ky:ky + h, kx:kx + ww])
        return out

    def resize(z, ho, wo, scale=None):
        A = _bilinear_matrix_np(ho, z.shape[2], scale=scale)
        B = _bilinear_matrix_np(wo, z.shape[3], scale=scale)
        return np.einsum('ph,nchw,qw->ncpq', A, z, B)

    outs = [conv(x)]
    if mirroring:
        xf = x[:, :, :, ::-1]
        outs.append(conv(xf)[:, :, :, ::-1])
    for p in (scales or []):
        hp, wp = int(math.floor(H * p)), int(math.floor(W * p))
        outs.append(resize(conv(resize(x, hp, wp, scale=p)), H, W))
        if mirroring:
            outs.append(resize(conv(resize(xf, hp, wp, scale=p))[:, :, :, ::-1],
                               H, W))
    return outs


if __name__ == "__main__":
    key = jax.random.PRNGKey(0)
    N, Cin, H, W = 2, 4, 16, 16
    Cout = 6

    k_x, k_w = jax.random.split(key, 2)
    x = jax.random.normal(k_x, (N, Cin, H, W), dtype=jnp.float32)
    # Deterministic base (Conv2d) parameters, PyTorch OIHW layout.
    weight = 0.1 * jax.random.normal(k_w, (Cout, Cin, 3, 3), dtype=jnp.float32)
    bias = jnp.linspace(-0.5, 0.5, Cout, dtype=jnp.float32)

    outs = msc_consistency_forward(x, weight, bias,
                                   scales=[0.5, 0.75], mirroring=True)
    outs = jax.block_until_ready(outs)

    # logits, logits_flipped, and 4 pyramid logits interpolated back to (H, W)
    assert len(outs) == 6
    refs = _reference_forward_np(x, weight, bias, [0.5, 0.75], True)
    for o, r in zip(outs, refs):
        assert o.shape == (N, Cout, H, W)
        assert bool(jnp.all(jnp.isfinite(o)))
        # Loose tolerance: robust to MXU fp32 pass decomposition, but far
        # tighter than any real roll/mask/weight-layout bug would produce.
        np.testing.assert_allclose(np.asarray(o), r, rtol=2e-2, atol=2e-2)

    print("KERNEL_OK")
</pallas_src>

<mosaic_0001>
module attributes {stable_mosaic.version = 11 : i64} {
  func.func @kernel(%arg0: i32, %arg1: memref<1x8x256xf32, #tpu.memory_space<vmem>>, %arg2: memref<12x72xf32, #tpu.memory_space<vmem>>, %arg3: memref<12x1xf32, #tpu.memory_space<vmem>>, %arg4: memref<72x256xf32, #tpu.memory_space<vmem>>, %arg5: memref<256x128xf32, #tpu.memory_space<vmem>>, %arg6: memref<128x256xf32, #tpu.memory_space<vmem>>, %arg7: memref<72x128xf32, #tpu.memory_space<vmem>>, %arg8: memref<256x256xf32, #tpu.memory_space<vmem>>, %arg9: memref<256x256xf32, #tpu.memory_space<vmem>>, %arg10: memref<72x256xf32, #tpu.memory_space<vmem>>, %arg11: memref<1x6x256xf32, #tpu.memory_space<vmem>>, %arg12: memref<1x6x256xf32, #tpu.memory_space<vmem>>, %arg13: memref<1x6x256xf32, #tpu.memory_space<vmem>>, %arg14: memref<1x6x256xf32, #tpu.memory_space<vmem>>, %arg15: memref<1x6x256xf32, #tpu.memory_space<vmem>>, %arg16: memref<1x6x256xf32, #tpu.memory_space<vmem>>) attributes {dimension_semantics = [#tpu.dimension_semantics<parallel>], iteration_bounds = array<i64: 2>, scalar_prefetch = 0 : i64, scratch_operands = 0 : i64, tpu.core_type = #tpu.core_type<tc>, window_params = [{transform_indices = @transform_0, window_bounds = array<i64: 1, 8, 256>}, {pipeline_mode = #tpu.pipeline_mode<synchronous>, transform_indices = @transform_1, window_bounds = array<i64: 12, 72>}, {pipeline_mode = #tpu.pipeline_mode<synchronous>, transform_indices = @transform_2, window_bounds = array<i64: 12, 1>}, {pipeline_mode = #tpu.pipeline_mode<synchronous>, transform_indices = @transform_3, window_bounds = array<i64: 72, 256>}, {pipeline_mode = #tpu.pipeline_mode<synchronous>, transform_indices = @transform_4, window_bounds = array<i64: 256, 128>}, {pipeline_mode = #tpu.pipeline_mode<synchronous>, transform_indices = @transform_5, window_bounds = array<i64: 128, 256>}, {pipeline_mode = #tpu.pipeline_mode<synchronous>, transform_indices = @transform_6, window_bounds = array<i64: 72, 128>}, {pipeline_mode = #tpu.pipeline_mode<synchronous>, transform_indices = @transform_7, window_bounds = array<i64: 256, 256>}, {pipeline_mode = #tpu.pipeline_mode<synchronous>, transform_indices = @transform_8, window_bounds = array<i64: 256, 256>}, {pipeline_mode = #tpu.pipeline_mode<synchronous>, transform_indices = @transform_9, window_bounds = array<i64: 72, 256>}, {transform_indices = @transform_10, window_bounds = array<i64: 1, 6, 256>}, {transform_indices = @transform_11, window_bounds = array<i64: 1, 6, 256>}, {transform_indices = @transform_12, window_bounds = array<i64: 1, 6, 256>}, {transform_indices = @transform_13, window_bounds = array<i64: 1, 6, 256>}, {transform_indices = @transform_14, window_bounds = array<i64: 1, 6, 256>}, {transform_indices = @transform_15, window_bounds = array<i64: 1, 6, 256>}]} {
    %c0 = arith.constant 0 : index
    %c0_0 = arith.constant 0 : index
    %c0_1 = arith.constant 0 : index
    %0 = vector.load %arg1[%c0, %c0_0, %c0_1] : memref<1x8x256xf32, #tpu.memory_space<vmem>>, vector<1x8x256xf32>
    %1 = vector.shape_cast %0 : vector<1x8x256xf32> to vector<8x256xf32>
    %c0_2 = arith.constant 0 : index
    %c0_3 = arith.constant 0 : index
    %2 = vector.load %arg2[%c0_2, %c0_3] : memref<12x72xf32, #tpu.memory_space<vmem>>, vector<12x72xf32>
    %c0_4 = arith.constant 0 : index
    %c0_5 = arith.constant 0 : index
    %3 = vector.load %arg3[%c0_4, %c0_5] : memref<12x1xf32, #tpu.memory_space<vmem>>, vector<12x1xf32>
    %c17_i32 = arith.constant 17 : i32
    %4 = tpu.dynamic_rotate %1 by %c17_i32 dim 1 : vector<8x256xf32>, i32 -> vector<8x256xf32>
    %c16_i32 = arith.constant 16 : i32
    %5 = tpu.dynamic_rotate %1 by %c16_i32 dim 1 : vector<8x256xf32>, i32 -> vector<8x256xf32>
    %c15_i32 = arith.constant 15 : i32
    %6 = tpu.dynamic_rotate %1 by %c15_i32 dim 1 : vector<8x256xf32>, i32 -> vector<8x256xf32>
    %c1_i32 = arith.constant 1 : i32
    %7 = tpu.dynamic_rotate %1 by %c1_i32 dim 1 : vector<8x256xf32>, i32 -> vector<8x256xf32>
    %c255_i32 = arith.constant 255 : i32
    %8 = tpu.dynamic_rotate %1 by %c255_i32 dim 1 : vector<8x256xf32>, i32 -> vector<8x256xf32>
    %c241_i32 = arith.constant 241 : i32
    %9 = tpu.dynamic_rotate %1 by %c241_i32 dim 1 : vector<8x256xf32>, i32 -> vector<8x256xf32>
    %c240_i32 = arith.constant 240 : i32
    %10 = tpu.dynamic_rotate %1 by %c240_i32 dim 1 : vector<8x256xf32>, i32 -> vector<8x256xf32>
    %c239_i32 = arith.constant 239 : i32
    %11 = tpu.dynamic_rotate %1 by %c239_i32 dim 1 : vector<8x256xf32>, i32 -> vector<8x256xf32>
    %12 = tpu.concatenate %4, %5, %6, %7, %1, %8, %9, %10, %11 in 0 : vector<8x256xf32>, vector<8x256xf32>, vector<8x256xf32>, vector<8x256xf32>, vector<8x256xf32>, vector<8x256xf32>, vector<8x256xf32>, vector<8x256xf32>, vector<8x256xf32> -> vector<72x256xf32>
    %c0_6 = arith.constant 0 : index
    %c0_7 = arith.constant 0 : index
    %13 = vector.load %arg4[%c0_6, %c0_7] : memref<72x256xf32, #tpu.memory_space<vmem>>, vector<72x256xf32>
    %14 = arith.mulf %12, %13 : vector<72x256xf32>
    %cst = arith.constant dense<0.000000e+00> : vector<12x256xf32>
    %15 = tpu.matmul %2, %14, %cst {dimension_numbers = #tpu.dot_dimension_numbers<[1], [0], [0], [1], [0, 0, 1, 1], [], []>} : vector<12x72xf32>, vector<72x256xf32>, vector<12x256xf32> -> vector<12x256xf32>
    %16 = vector.broadcast %3 : vector<12x1xf32> to vector<12x256xf32>
    %17 = arith.addf %15, %16 : vector<12x256xf32>
    %18 = vector.extract_strided_slice %17 {offsets = [0, 0], sizes = [6, 256], strides = [1, 1]} : vector<12x256xf32> to vector<6x256xf32>
    %c0_8 = arith.constant 0 : index
    %c0_9 = arith.constant 0 : index
    %c0_10 = arith.constant 0 : index
    %19 = vector.load %arg11[%c0_8, %c0_9, %c0_10] : memref<1x6x256xf32, #tpu.memory_space<vmem>>, vector<1x6x256xf32>
    %20 = vector.shape_cast %19 : vector<1x6x256xf32> to vector<6x256xf32>
    %21 = vector.shape_cast %18 : vector<6x256xf32> to vector<1x6x256xf32>
    tpu.vector_store %arg11[%c0_8, %c0_9, %c0_10], %21 {strides = array<i32>} : memref<1x6x256xf32, #tpu.memory_space<vmem>>, vector<1x6x256xf32>,
    %22 = vector.extract_strided_slice %17 {offsets = [6, 0], sizes = [6, 256], strides = [1, 1]} : vector<12x256xf32> to vector<6x256xf32>
    %c0_11 = arith.constant 0 : index
    %c0_12 = arith.constant 0 : index
    %c0_13 = arith.constant 0 : index
    %23 = vector.load %arg12[%c0_11, %c0_12, %c0_13] : memref<1x6x256xf32, #tpu.memory_space<vmem>>, vector<1x6x256xf32>
    %24 = vector.shape_cast %23 : vector<1x6x256xf32> to vector<6x256xf32>
    %25 = vector.shape_cast %22 : vector<6x256xf32> to vector<1x6x256xf32>
    tpu.vector_store %arg12[%c0_11, %c0_12, %c0_13], %25 {strides = array<i32>} : memref<1x6x256xf32, #tpu.memory_space<vmem>>, vector<1x6x256xf32>,
    %c0_14 = arith.constant 0 : index
    %c0_15 = arith.constant 0 : index
    %26 = vector.load %arg5[%c0_14, %c0_15] : memref<256x128xf32, #tpu.memory_space<vmem>>, vector<256x128xf32>
    %cst_16 = arith.constant dense<0.000000e+00> : vector<8x128xf32>
    %27 = tpu.matmul %1, %26, %cst_16 {dimension_numbers = #tpu.dot_dimension_numbers<[1], [0], [0], [1], [0, 0, 1, 1], [], []>} : vector<8x256xf32>, vector<256x128xf32>, vector<8x128xf32> -> vector<8x128xf32>
    %c9_i32 = arith.constant 9 : i32
    %28 = tpu.dynamic_rotate %27 by %c9_i32 dim 1 : vector<8x128xf32>, i32 -> vector<8x128xf32>
    %c8_i32 = arith.constant 8 : i32
    %29 = tpu.dynamic_rotate %27 by %c8_i32 dim 1 : vector<8x128xf32>, i32 -> vector<8x128xf32>
    %c7_i32 = arith.constant 7 : i32
    %30 = tpu.dynamic_rotate %27 by %c7_i32 dim 1 : vector<8x128xf32>, i32 -> vector<8x128xf32>
    %c1_i32_17 = arith.constant 1 : i32
    %31 = tpu.dynamic_rotate %27 by %c1_i32_17 dim 1 : vector<8x128xf32>, i32 -> vector<8x128xf32>
    %c127_i32 = arith.constant 127 : i32
    %32 = tpu.dynamic_rotate %27 by %c127_i32 dim 1 : vector<8x128xf32>, i32 -> vector<8x128xf32>
    %c121_i32 = arith.constant 121 : i32
    %33 = tpu.dynamic_rotate %27 by %c121_i32 dim 1 : vector<8x128xf32>, i32 -> vector<8x128xf32>
    %c120_i32 = arith.constant 120 : i32
    %34 = tpu.dynamic_rotate %27 by %c120_i32 dim 1 : vector<8x128xf32>, i32 -> vector<8x128xf32>
    %c119_i32 = arith.constant 119 : i32
    %35 = tpu.dynamic_rotate %27 by %c119_i32 dim 1 : vector<8x128xf32>, i32 -> vector<8x128xf32>
    %36 = tpu.concatenate %28, %29, %30, %31, %27, %32, %33, %34, %35 in 0 : vector<8x128xf32>, vector<8x128xf32>, vector<8x128xf32>, vector<8x128xf32>, vector<8x128xf32>, vector<8x128xf32>, vector<8x128xf32>, vector<8x128xf32>, vector<8x128xf32> -> vector<72x128xf32>
    %c0_18 = arith.constant 0 : index
    %c0_19 = arith.constant 0 : index
    %37 = vector.load %arg7[%c0_18, %c0_19] : memref<72x128xf32, #tpu.memory_space<vmem>>, vector<72x128xf32>
    %38 = arith.mulf %36, %37 : vector<72x128xf32>
    %cst_20 = arith.constant dense<0.000000e+00> : vector<12x128xf32>
    %39 = tpu.matmul %2, %38, %cst_20 {dimension_numbers = #tpu.dot_dimension_numbers<[1], [0], [0], [1], [0, 0, 1, 1], [], []>} : vector<12x72xf32>, vector<72x128xf32>, vector<12x128xf32> -> vector<12x128xf32>
    %c0_21 = arith.constant 0 : index
    %c0_22 = arith.constant 0 : index
    %40 = vector.load %arg6[%c0_21, %c0_22] : memref<128x256xf32, #tpu.memory_space<vmem>>, vector<128x256xf32>
    %cst_23 = arith.constant dense<0.000000e+00> : vector<12x256xf32>
    %41 = tpu.matmul %39, %40, %cst_23 {dimension_numbers = #tpu.dot_dimension_numbers<[1], [0], [0], [1], [0, 0, 1, 1], [], []>} : vector<12x128xf32>, vector<128x256xf32>, vector<12x256xf32> -> vector<12x256xf32>
    %42 = vector.broadcast %3 : vector<12x1xf32> to vector<12x256xf32>
    %43 = arith.addf %41, %42 : vector<12x256xf32>
    %44 = vector.extract_strided_slice %43 {offsets = [0, 0], sizes = [6, 256], strides = [1, 1]} : vector<12x256xf32> to vector<6x256xf32>
    %c0_24 = arith.constant 0 : index
    %c0_25 = arith.constant 0 : index
    %c0_26 = arith.constant 0 : index
    %45 = vector.load %arg13[%c0_24, %c0_25, %c0_26] : memref<1x6x256xf32, #tpu.memory_space<vmem>>, vector<1x6x256xf32>
    %46 = vector.shape_cast %45 : vector<1x6x256xf32> to vector<6x256xf32>
    %47 = vector.shape_cast %44 : vector<6x256xf32> to vector<1x6x256xf32>
    tpu.vector_store %arg13[%c0_24, %c0_25, %c0_26], %47 {strides = array<i32>} : memref<1x6x256xf32, #tpu.memory_space<vmem>>, vector<1x6x256xf32>,
    %48 = vector.extract_strided_slice %43 {offsets = [6, 0], sizes = [6, 256], strides = [1, 1]} : vector<12x256xf32> to vector<6x256xf32>
    %c0_27 = arith.constant 0 : index
    %c0_28 = arith.constant 0 : index
    %c0_29 = arith.constant 0 : index
    %49 = vector.load %arg14[%c0_27, %c0_28, %c0_29] : memref<1x6x256xf32, #tpu.memory_space<vmem>>, vector<1x6x256xf32>
    %50 = vector.shape_cast %49 : vector<1x6x256xf32> to vector<6x256xf32>
    %51 = vector.shape_cast %48 : vector<6x256xf32> to vector<1x6x256xf32>
    tpu.vector_store %arg14[%c0_27, %c0_28, %c0_29], %51 {strides = array<i32>} : memref<1x6x256xf32, #tpu.memory_space<vmem>>, vector<1x6x256xf32>,
    %c0_30 = arith.constant 0 : index
    %c0_31 = arith.constant 0 : index
    %52 = vector.load %arg8[%c0_30, %c0_31] : memref<256x256xf32, #tpu.memory_space<vmem>>, vector<256x256xf32>
    %cst_32 = arith.constant dense<0.000000e+00> : vector<8x256xf32>
    %53 = tpu.matmul %1, %52, %cst_32 {dimension_numbers = #tpu.dot_dimension_numbers<[1], [0], [0], [1], [0, 0, 1, 1], [], []>} : vector<8x256xf32>, vector<256x256xf32>, vector<8x256xf32> -> vector<8x256xf32>
    %c13_i32 = arith.constant 13 : i32
    %54 = tpu.dynamic_rotate %53 by %c13_i32 dim 1 : vector<8x256xf32>, i32 -> vector<8x256xf32>
    %c12_i32 = arith.constant 12 : i32
    %55 = tpu.dynamic_rotate %53 by %c12_i32 dim 1 : vector<8x256xf32>, i32 -> vector<8x256xf32>
    %c11_i32 = arith.constant 11 : i32
    %56 = tpu.dynamic_rotate %53 by %c11_i32 dim 1 : vector<8x256xf32>, i32 -> vector<8x256xf32>
    %c1_i32_33 = arith.constant 1 : i32
    %57 = tpu.dynamic_rotate %53 by %c1_i32_33 dim 1 : vector<8x256xf32>, i32 -> vector<8x256xf32>
    %c255_i32_34 = arith.constant 255 : i32
    %58 = tpu.dynamic_rotate %53 by %c255_i32_34 dim 1 : vector<8x256xf32>, i32 -> vector<8x256xf32>
    %c245_i32 = arith.constant 245 : i32
    %59 = tpu.dynamic_rotate %53 by %c245_i32 dim 1 : vector<8x256xf32>, i32 -> vector<8x256xf32>
    %c244_i32 = arith.constant 244 : i32
    %60 = tpu.dynamic_rotate %53 by %c244_i32 dim 1 : vector<8x256xf32>, i32 -> vector<8x256xf32>
    %c243_i32 = arith.constant 243 : i32
    %61 = tpu.dynamic_rotate %53 by %c243_i32 dim 1 : vector<8x256xf32>, i32 -> vector<8x256xf32>
    %62 = tpu.concatenate %54, %55, %56, %57, %53, %58, %59, %60, %61 in 0 : vector<8x256xf32>, vector<8x256xf32>, vector<8x256xf32>, vector<8x256xf32>, vector<8x256xf32>, vector<8x256xf32>, vector<8x256xf32>, vector<8x256xf32>, vector<8x256xf32> -> vector<72x256xf32>
    %c0_35 = arith.constant 0 : index
    %c0_36 = arith.constant 0 : index
    %63 = vector.load %arg10[%c0_35, %c0_36] : memref<72x256xf32, #tpu.memory_space<vmem>>, vector<72x256xf32>
    %64 = arith.mulf %62, %63 : vector<72x256xf32>
    %cst_37 = arith.constant dense<0.000000e+00> : vector<12x256xf32>
    %65 = tpu.matmul %2, %64, %cst_37 {dimension_numbers = #tpu.dot_dimension_numbers<[1], [0], [0], [1], [0, 0, 1, 1], [], []>} : vector<12x72xf32>, vector<72x256xf32>, vector<12x256xf32> -> vector<12x256xf32>
    %c0_38 = arith.constant 0 : index
    %c0_39 = arith.constant 0 : index
    %66 = vector.load %arg9[%c0_38, %c0_39] : memref<256x256xf32, #tpu.memory_space<vmem>>, vector<256x256xf32>
    %cst_40 = arith.constant dense<0.000000e+00> : vector<12x256xf32>
    %67 = tpu.matmul %65, %66, %cst_40 {dimension_numbers = #tpu.dot_dimension_numbers<[1], [0], [0], [1], [0, 0, 1, 1], [], []>} : vector<12x256xf32>, vector<256x256xf32>, vector<12x256xf32> -> vector<12x256xf32>
    %68 = vector.broadcast %3 : vector<12x1xf32> to vector<12x256xf32>
    %69 = arith.addf %67, %68 : vector<12x256xf32>
    %70 = vector.extract_strided_slice %69 {offsets = [0, 0], sizes = [6, 256], strides = [1, 1]} : vector<12x256xf32> to vector<6x256xf32>
    %c0_41 = arith.constant 0 : index
    %c0_42 = arith.constant 0 : index
    %c0_43 = arith.constant 0 : index
    %71 = vector.load %arg15[%c0_41, %c0_42, %c0_43] : memref<1x6x256xf32, #tpu.memory_space<vmem>>, vector<1x6x256xf32>
    %72 = vector.shape_cast %71 : vector<1x6x256xf32> to vector<6x256xf32>
    %73 = vector.shape_cast %70 : vector<6x256xf32> to vector<1x6x256xf32>
    tpu.vector_store %arg15[%c0_41, %c0_42, %c0_43], %73 {strides = array<i32>} : memref<1x6x256xf32, #tpu.memory_space<vmem>>, vector<1x6x256xf32>,
    %74 = vector.extract_strided_slice %69 {offsets = [6, 0], sizes = [6, 256], strides = [1, 1]} : vector<12x256xf32> to vector<6x256xf32>
    %c0_44 = arith.constant 0 : index
    %c0_45 = arith.constant 0 : index
    %c0_46 = arith.constant 0 : index
    %75 = vector.load %arg16[%c0_44, %c0_45, %c0_46] : memref<1x6x256xf32, #tpu.memory_space<vmem>>, vector<1x6x256xf32>
    %76 = vector.shape_cast %75 : vector<1x6x256xf32> to vector<6x256xf32>
    %77 = vector.shape_cast %74 : vector<6x256xf32> to vector<1x6x256xf32>
    tpu.vector_store %arg16[%c0_44, %c0_45, %c0_46], %77 {strides = array<i32>} : memref<1x6x256xf32, #tpu.memory_space<vmem>>, vector<1x6x256xf32>,
    return
  }
  func.func @transform_0(%arg0: i32) -> (i32, i32, i32) {
    %c0_i32 = arith.constant 0 : i32
    %c0_i32_0 = arith.constant 0 : i32
    %c0_i32_1 = arith.constant 0 : i32
    return %arg0, %c0_i32, %c0_i32_0 : i32, i32, i32
  }
  func.func @transform_1(%arg0: i32) -> (i32, i32) {
    %c0_i32 = arith.constant 0 : i32
    %c0_i32_0 = arith.constant 0 : i32
    %c0_i32_1 = arith.constant 0 : i32
    return %c0_i32, %c0_i32_0 : i32, i32
  }
  func.func @transform_2(%arg0: i32) -> (i32, i32) {
    %c0_i32 = arith.constant 0 : i32
    %c0_i32_0 = arith.constant 0 : i32
    %c0_i32_1 = arith.constant 0 : i32
    return %c0_i32, %c0_i32_0 : i32, i32
  }
  func.func @transform_3(%arg0: i32) -> (i32, i32) {
    %c0_i32 = arith.constant 0 : i32
    %c0_i32_0 = arith.constant 0 : i32
    %c0_i32_1 = arith.constant 0 : i32
    return %c0_i32, %c0_i32_0 : i32, i32
  }
  func.func @transform_4(%arg0: i32) -> (i32, i32) {
    %c0_i32 = arith.constant 0 : i32
    %c0_i32_0 = arith.constant 0 : i32
    %c0_i32_1 = arith.constant 0 : i32
    return %c0_i32, %c0_i32_0 : i32, i32
  }
  func.func @transform_5(%arg0: i32) -> (i32, i32) {
    %c0_i32 = arith.constant 0 : i32
    %c0_i32_0 = arith.constant 0 : i32
    %c0_i32_1 = arith.constant 0 : i32
    return %c0_i32, %c0_i32_0 : i32, i32
  }
  func.func @transform_6(%arg0: i32) -> (i32, i32) {
    %c0_i32 = arith.constant 0 : i32
    %c0_i32_0 = arith.constant 0 : i32
    %c0_i32_1 = arith.constant 0 : i32
    return %c0_i32, %c0_i32_0 : i32, i32
  }
  func.func @transform_7(%arg0: i32) -> (i32, i32) {
    %c0_i32 = arith.constant 0 : i32
    %c0_i32_0 = arith.constant 0 : i32
    %c0_i32_1 = arith.constant 0 : i32
    return %c0_i32, %c0_i32_0 : i32, i32
  }
  func.func @transform_8(%arg0: i32) -> (i32, i32) {
    %c0_i32 = arith.constant 0 : i32
    %c0_i32_0 = arith.constant 0 : i32
    %c0_i32_1 = arith.constant 0 : i32
    return %c0_i32, %c0_i32_0 : i32, i32
  }
  func.func @transform_9(%arg0: i32) -> (i32, i32) {
    %c0_i32 = arith.constant 0 : i32
    %c0_i32_0 = arith.constant 0 : i32
    %c0_i32_1 = arith.constant 0 : i32
    return %c0_i32, %c0_i32_0 : i32, i32
  }
  func.func @transform_10(%arg0: i32) -> (i32, i32, i32) {
    %c0_i32 = arith.constant 0 : i32
    %c0_i32_0 = arith.constant 0 : i32
    %c0_i32_1 = arith.constant 0 : i32
    return %arg0, %c0_i32, %c0_i32_0 : i32, i32, i32
  }
  func.func @transform_11(%arg0: i32) -> (i32, i32, i32) {
    %c0_i32 = arith.constant 0 : i32
    %c0_i32_0 = arith.constant 0 : i32
    %c0_i32_1 = arith.constant 0 : i32
    return %arg0, %c0_i32, %c0_i32_0 : i32, i32, i32
  }
  func.func @transform_12(%arg0: i32) -> (i32, i32, i32) {
    %c0_i32 = arith.constant 0 : i32
    %c0_i32_0 = arith.constant 0 : i32
    %c0_i32_1 = arith.constant 0 : i32
    return %arg0, %c0_i32, %c0_i32_0 : i32, i32, i32
  }
  func.func @transform_13(%arg0: i32) -> (i32, i32, i32) {
    %c0_i32 = arith.constant 0 : i32
    %c0_i32_0 = arith.constant 0 : i32
    %c0_i32_1 = arith.constant 0 : i32
    return %arg0, %c0_i32, %c0_i32_0 : i32, i32, i32
  }
  func.func @transform_14(%arg0: i32) -> (i32, i32, i32) {
    %c0_i32 = arith.constant 0 : i32
    %c0_i32_0 = arith.constant 0 : i32
    %c0_i32_1 = arith.constant 0 : i32
    return %arg0, %c0_i32, %c0_i32_0 : i32, i32, i32
  }
  func.func @transform_15(%arg0: i32) -> (i32, i32, i32) {
    %c0_i32 = arith.constant 0 : i32
    %c0_i32_0 = arith.constant 0 : i32
    %c0_i32_1 = arith.constant 0 : i32
    return %arg0, %c0_i32, %c0_i32_0 : i32, i32, i32
  }
}

</mosaic_0001>

<llo_original>
// kernel: tpu_custom_call.1
$region0: #{tpu_custom_call.1}
  #allocation0 [shape = 'u32[]', space=smem, size = 0x4, offset = 0x4, fixed_abs, tag = 'smem constant byte address 0x4 - core index']
  #allocation1 [shape = 'u32[72,128]{1,0:T(1,128)}', space=vmem, size = 0x9000, scoped, tag = 'internal scratch']
  %s0 = inlined_call_operand.hbm [shape: f32[2,8,256], index: 0, kind: input, shape index: {}]
  %s1 = inlined_call_operand.vmem [shape: f32[12,72], index: 1, kind: input, shape index: {}]
  %s2 = inlined_call_operand.vmem [shape: f32[12,1], index: 2, kind: input, shape index: {}]
  %s3 = inlined_call_operand.hbm [shape: f32[72,256], index: 3, kind: input, shape index: {}]
  %s4 = inlined_call_operand.hbm [shape: f32[256,128], index: 4, kind: input, shape index: {}]
  %s5 = inlined_call_operand.hbm [shape: f32[128,256], index: 5, kind: input, shape index: {}]
  %s6 = inlined_call_operand.hbm [shape: f32[72,128], index: 6, kind: input, shape index: {}]
  %s7 = inlined_call_operand.hbm [shape: f32[256,256], index: 7, kind: input, shape index: {}]
  %s8 = inlined_call_operand.hbm [shape: f32[256,256], index: 8, kind: input, shape index: {}]
  %s9 = inlined_call_operand.hbm [shape: f32[72,256], index: 9, kind: input, shape index: {}]
  %s10 = inlined_call_operand.vmem [shape: f32[2,6,256], index: 10, kind: output, shape index: {0}]
  %s11 = inlined_call_operand.vmem [shape: f32[2,6,256], index: 11, kind: output, shape index: {1}]
  %s12 = inlined_call_operand.vmem [shape: f32[2,6,256], index: 12, kind: output, shape index: {2}]
  %s13 = inlined_call_operand.vmem [shape: f32[2,6,256], index: 13, kind: output, shape index: {3}]
  %s14 = inlined_call_operand.vmem [shape: f32[2,6,256], index: 14, kind: output, shape index: {4}]
  %s15 = inlined_call_operand.vmem [shape: f32[2,6,256], index: 15, kind: output, shape index: {5}]
  %16 = xla_tuple %s10, %s11, %s12, %s13, %s14, %s15
  %s17 = sld [smem:[#allocation0]]
  $region145: #{tpu_custom_call.1} parent=0
    _
  %s19 = ssub.s32 1, %s17
  %s20 = scalar_select 0, %s19, %s17
  $region1: #{tpu_custom_call.1} parent=0
    #allocation2 [shape = 'u8[16384]{0}', space=vmem, size = 0x4000, scoped, tag = 'input window, operand 0']
    #allocation3 [shape = 's32[2]{0}', space=sflag, size = 0x8, scoped, tag = 'scoped memory for tpu_custom_call.1']
    #allocation4 [shape = 'u8[73728]{0}', space=vmem, size = 0x12000, scoped, tag = 'input window, operand 3, single buffered']
    #allocation5 [shape = 's32[1]{0}', space=sflag, size = 0x4, scoped, tag = 'scoped memory for tpu_custom_call.1']
    #allocation6 [shape = 'u8[131072]{0}', space=vmem, size = 0x20000, scoped, tag = 'input window, operand 4, single buffered']
    #allocation7 [shape = 'u8[131072]{0}', space=vmem, size = 0x20000, scoped, tag = 'input window, operand 5, single buffered']
    #allocation8 [shape = 's32[1]{0}', space=sflag, size = 0x4, scoped, tag = 'scoped memory for tpu_custom_call.1']
    #allocation9 [shape = 'u8[36864]{0}', space=vmem, size = 0x9000, scoped, tag = 'input window, operand 6, single buffered']
    #allocation10 [shape = 'u8[262144]{0}', space=vmem, size = 0x40000, scoped, tag = 'input window, operand 7, single buffered']
    #allocation11 [shape = 's32[1]{0}', space=sflag, size = 0x4, scoped, tag = 'scoped memory for tpu_custom_call.1']
    #allocation12 [shape = 'u8[262144]{0}', space=vmem, size = 0x40000, scoped, tag = 'input window, operand 8, single buffered']
    #allocation13 [shape = 'u8[73728]{0}', space=vmem, size = 0x12000, scoped, tag = 'input window, operand 9, single buffered']
    #allocation14 [shape = 's32[1]{0}', space=sflag, size = 0x4, scoped, tag = 'scoped memory for tpu_custom_call.1']
    %21 = vsyncpa [#allocation3], 0
    %s22 = scalar_lea.sflag [#allocation3], 1
    %23 = vsyncpa %s22, 0
    %24 = vsyncpa [#allocation5], 0
    %25 = vsyncpa [#allocation8], 0
    %26 = vsyncpa [#allocation11], 0
    %27 = vsyncpa [#allocation14], 0
    loop: start=0, step=1, limit=4
    $region2: #{tpu_custom_call.1} parent=1 // loop_pre_header
      _
    $region3: #{tpu_custom_call.1} parent=1 // loop_header
      %s29 = sphi 0, %s33
      %p30 = scmp.ge.s32.totalorder %s29, 4
      %s39 = sphi 0, %s41
      %s42 = sphi 0, %s39
      %s43 = sphi 0, %s42
      %s59 = sphi 0, %s43
      %s63 = sphi 0, %s63
      %s65 = sphi 0, %s63
      %s66 = sphi 0, %s65
      %s80 = sphi 0, %s66
      %s84 = sphi 0, %s84
      %s86 = sphi 0, %s84
      %s87 = sphi 0, %s86
      %s101 = sphi 0, %s87
      %s105 = sphi 0, %s105
      %s107 = sphi 0, %s105
      %s108 = sphi 0, %s107
      %s122 = sphi 0, %s108
      %s126 = sphi 0, %s126
      %s128 = sphi 0, %s126
      %s129 = sphi 0, %s128
      %s143 = sphi 0, %s129
      %s147 = sphi 0, %s147
      %s149 = sphi 0, %s147
      %s150 = sphi 0, %s149
      %s164 = sphi 0, %s150
      %s168 = sphi 0, %s168
      %s170 = sphi 0, %s168
      %s171 = sphi 0, %s170
      %s185 = sphi 0, %s171
      %s189 = sphi 0, %s189
      %s191 = sphi 0, %s189
      %s192 = sphi 0, %s191
      %s206 = sphi 0, %s192
      %s210 = sphi 0, %s210
      %s212 = sphi 0, %s210
      %s213 = sphi 0, %s212
      %s227 = sphi 0, %s213
      %s231 = sphi 0, %s231
      %s233 = sphi 0, %s231
      %s234 = sphi 0, %s233
      %s248 = sphi 0, %s234
      %s254 = sphi 0, %s256
      %s257 = sphi 0, %s254
      %s258 = sphi 0, %s257
      %s274 = sphi 0, %s258
      %s280 = sphi 0, %s282
      %s283 = sphi 0, %s280
      %s284 = sphi 0, %s283
      %s300 = sphi 0, %s284
      %s306 = sphi 0, %s308
      %s309 = sphi 0, %s306
      %s310 = sphi 0, %s309
      %s326 = sphi 0, %s310
      %s332 = sphi 0, %s334
      %s335 = sphi 0, %s332
      %s336 = sphi 0, %s335
      %s352 = sphi 0, %s336
      %s358 = sphi 0, %s360
      %s361 = sphi 0, %s358
      %s362 = sphi 0, %s361
      %s378 = sphi 0, %s362
      %s384 = sphi 0, %s386
      %s387 = sphi 0, %s384
      %s388 = sphi 0, %s387
      %s404 = sphi 0, %s388
    $region4: #{tpu_custom_call.1} parent=1 // loop_header_branch
      %32 = sbr.rel (%p30) target = $region8
    $region5: #{tpu_custom_call.1} parent=1 // loop_body
      %s34 = ssub.s32 %s29, 1
      %s35 = ssub.s32 %s29, 2
      %s36 = sadd.s32 %s29, 1
      %s37 = ssub.s32 %s29, %s36
      %p38 = scmp.eq.s32.totalorder %s37, 0
      %s40 = sadd.s32 %s39, 1
      %s41 = scalar_select %p38, %s39, %s40
      %p44 = pneg %p38
      %p45 = scmp.eq.s32.totalorder %s29, 1
      %p46 = por %p44, %p45
      %p47 = scmp.ne.s32.totalorder %s39, %s42
      %p48 = scmp.eq.s32.totalorder %s29, 0
      %p49 = por %p47, %p48
      %p50 = scmp.ne.s32.totalorder %s39, %s42
      %p51 = scmp.eq.s32.totalorder %s34, 1
      %p52 = por %p50, %p51
      %p53 = scmp.ne.s32.totalorder %s42, %s43
      %p54 = scmp.eq.s32.totalorder %s34, 0
      %p55 = por %p53, %p54
      %p56 = scmp.ne.s32.totalorder %s42, %s43
      %p57 = scmp.eq.s32.totalorder %s35, 1
      %p58 = por %p56, %p57
      %p60 = scmp.ne.s32.totalorder %s43, %s59
      %p61 = scmp.eq.s32.totalorder %s35, 0
      %p62 = por %p60, %p61
      %s64 = sadd.s32 %s63, 1
      %p67 = scmp.eq.s32.totalorder %s29, 1
      %p68 = scmp.ne.s32.totalorder %s63, %s65
      %p69 = scmp.eq.s32.totalorder %s29, 0
      %p70 = por %p68, %p69
      %p71 = scmp.ne.s32.totalorder %s63, %s65
      %p72 = scmp.eq.s32.totalorder %s34, 1
      %p73 = por %p71, %p72
      %p74 = scmp.ne.s32.totalorder %s65, %s66
      %p75 = scmp.eq.s32.totalorder %s34, 0
      %p76 = por %p74, %p75
      %p77 = scmp.ne.s32.totalorder %s65, %s66
      %p78 = scmp.eq.s32.totalorder %s35, 1
      %p79 = por %p77, %p78
      %p81 = scmp.ne.s32.totalorder %s66, %s80
      %p82 = scmp.eq.s32.totalorder %s35, 0
      %p83 = por %p81, %p82
      %s85 = sadd.s32 %s84, 1
      %p88 = scmp.eq.s32.totalorder %s29, 1
      %p89 = scmp.ne.s32.totalorder %s84, %s86
      %p90 = scmp.eq.s32.totalorder %s29, 0
      %p91 = por %p89, %p90
      %p92 = scmp.ne.s32.totalorder %s84, %s86
      %p93 = scmp.eq.s32.totalorder %s34, 1
      %p94 = por %p92, %p93
      %p95 = scmp.ne.s32.totalorder %s86, %s87
      %p96 = scmp.eq.s32.totalorder %s34, 0
      %p97 = por %p95, %p96
      %p98 = scmp.ne.s32.totalorder %s86, %s87
      %p99 = scmp.eq.s32.totalorder %s35, 1
      %p100 = por %p98, %p99
      %p102 = scmp.ne.s32.totalorder %s87, %s101
      %p103 = scmp.eq.s32.totalorder %s35, 0
      %p104 = por %p102, %p103
      %s106 = sadd.s32 %s105, 1
      %p109 = scmp.eq.s32.totalorder %s29, 1
      %p110 = scmp.ne.s32.totalorder %s105, %s107
      %p111 = scmp.eq.s32.totalorder %s29, 0
      %p112 = por %p110, %p111
      %p113 = scmp.ne.s32.totalorder %s105, %s107
      %p114 = scmp.eq.s32.totalorder %s34, 1
      %p115 = por %p113, %p114
      %p116 = scmp.ne.s32.totalorder %s107, %s108
      %p117 = scmp.eq.s32.totalorder %s34, 0
      %p118 = por %p116, %p117
      %p119 = scmp.ne.s32.totalorder %s107, %s108
      %p120 = scmp.eq.s32.totalorder %s35, 1
      %p121 = por %p119, %p120
      %p123 = scmp.ne.s32.totalorder %s108, %s122
      %p124 = scmp.eq.s32.totalorder %s35, 0
      %p125 = por %p123, %p124
      %s127 = sadd.s32 %s126, 1
      %p130 = scmp.eq.s32.totalorder %s29, 1
      %p131 = scmp.ne.s32.totalorder %s126, %s128
      %p132 = scmp.eq.s32.totalorder %s29, 0
      %p133 = por %p131, %p132
      %p134 = scmp.ne.s32.totalorder %s126, %s128
      %p135 = scmp.eq.s32.totalorder %s34, 1
      %p136 = por %p134, %p135
      %p137 = scmp.ne.s32.totalorder %s128, %s129
      %p138 = scmp.eq.s32.totalorder %s34, 0
      %p139 = por %p137, %p138
      %p140 = scmp.ne.s32.totalorder %s128, %s129
      %p141 = scmp.eq.s32.totalorder %s35, 1
      %p142 = por %p140, %p141
      %p144 = scmp.ne.s32.totalorder %s129, %s143
      %p145 = scmp.eq.s32.totalorder %s35, 0
      %p146 = por %p144, %p145
      %s148 = sadd.s32 %s147, 1
      %p151 = scmp.eq.s32.totalorder %s29, 1
      %p152 = scmp.ne.s32.totalorder %s147, %s149
      %p153 = scmp.eq.s32.totalorder %s29, 0
      %p154 = por %p152, %p153
      %p155 = scmp.ne.s32.totalorder %s147, %s149
      %p156 = scmp.eq.s32.totalorder %s34, 1
      %p157 = por %p155, %p156
      %p158 = scmp.ne.s32.totalorder %s149, %s150
      %p159 = scmp.eq.s32.totalorder %s34, 0
      %p160 = por %p158, %p159
      %p161 = scmp.ne.s32.totalorder %s149, %s150
      %p162 = scmp.eq.s32.totalorder %s35, 1
      %p163 = por %p161, %p162
      %p165 = scmp.ne.s32.totalorder %s150, %s164
      %p166 = scmp.eq.s32.totalorder %s35, 0
      %p167 = por %p165, %p166
      %s169 = sadd.s32 %s168, 1
      %p172 = scmp.eq.s32.totalorder %s29, 1
      %p173 = scmp.ne.s32.totalorder %s168, %s170
      %p174 = scmp.eq.s32.totalorder %s29, 0
      %p175 = por %p173, %p174
      %p176 = scmp.ne.s32.totalorder %s168, %s170
      %p177 = scmp.eq.s32.totalorder %s34, 1
      %p178 = por %p176, %p177
      %p179 = scmp.ne.s32.totalorder %s170, %s171
      %p180 = scmp.eq.s32.totalorder %s34, 0
      %p181 = por %p179, %p180
      %p182 = scmp.ne.s32.totalorder %s170, %s171
      %p183 = scmp.eq.s32.totalorder %s35, 1
      %p184 = por %p182, %p183
      %p186 = scmp.ne.s32.totalorder %s171, %s185
      %p187 = scmp.eq.s32.totalorder %s35, 0
      %p188 = por %p186, %p187
      %s190 = sadd.s32 %s189, 1
      %p193 = scmp.eq.s32.totalorder %s29, 1
      %p194 = scmp.ne.s32.totalorder %s189, %s191
      %p195 = scmp.eq.s32.totalorder %s29, 0
      %p196 = por %p194, %p195
      %p197 = scmp.ne.s32.totalorder %s189, %s191
      %p198 = scmp.eq.s32.totalorder %s34, 1
      %p199 = por %p197, %p198
      %p200 = scmp.ne.s32.totalorder %s191, %s192
      %p201 = scmp.eq.s32.totalorder %s34, 0
      %p202 = por %p200, %p201
      %p203 = scmp.ne.s32.totalorder %s191, %s192
      %p204 = scmp.eq.s32.totalorder %s35, 1
      %p205 = por %p203, %p204
      %p207 = scmp.ne.s32.totalorder %s192, %s206
      %p208 = scmp.eq.s32.totalorder %s35, 0
      %p209 = por %p207, %p208
      %s211 = sadd.s32 %s210, 1
      %p214 = scmp.eq.s32.totalorder %s29, 1
      %p215 = scmp.ne.s32.totalorder %s210, %s212
      %p216 = scmp.eq.s32.totalorder %s29, 0
      %p217 = por %p215, %p216
      %p218 = scmp.ne.s32.totalorder %s210, %s212
      %p219 = scmp.eq.s32.totalorder %s34, 1
      %p220 = por %p218, %p219
      %p221 = scmp.ne.s32.totalorder %s212, %s213
      %p222 = scmp.eq.s32.totalorder %s34, 0
      %p223 = por %p221, %p222
      %p224 = scmp.ne.s32.totalorder %s212, %s213
      %p225 = scmp.eq.s32.totalorder %s35, 1
      %p226 = por %p224, %p225
      %p228 = scmp.ne.s32.totalorder %s213, %s227
      %p229 = scmp.eq.s32.totalorder %s35, 0
      %p230 = por %p228, %p229
      %s232 = sadd.s32 %s231, 1
      %p235 = scmp.eq.s32.totalorder %s29, 1
      %p236 = scmp.ne.s32.totalorder %s231, %s233
      %p237 = scmp.eq.s32.totalorder %s29, 0
      %p238 = por %p236, %p237
      %p239 = scmp.ne.s32.totalorder %s231, %s233
      %p240 = scmp.eq.s32.totalorder %s34, 1
      %p241 = por %p239, %p240
      %p242 = scmp.ne.s32.totalorder %s233, %s234
      %p243 = scmp.eq.s32.totalorder %s34, 0
      %p244 = por %p242, %p243
      %p245 = scmp.ne.s32.totalorder %s233, %s234
      %p246 = scmp.eq.s32.totalorder %s35, 1
      %p247 = por %p245, %p246
      %p249 = scmp.ne.s32.totalorder %s234, %s248
      %p250 = scmp.eq.s32.totalorder %s35, 0
      %p251 = por %p249, %p250
      %s252 = ssub.s32 %s29, %s36
      %p253 = scmp.eq.s32.totalorder %s252, 0
      %s255 = sadd.s32 %s254, 1
      %s256 = scalar_select %p253, %s254, %s255
      %p259 = pneg %p253
      %p260 = scmp.eq.s32.totalorder %s29, 1
      %p261 = por %p259, %p260
      %p262 = scmp.ne.s32.totalorder %s254, %s257
      %p263 = scmp.eq.s32.totalorder %s29, 0
      %p264 = por %p262, %p263
      %p265 = scmp.ne.s32.totalorder %s254, %s257
      %p266 = scmp.eq.s32.totalorder %s34, 1
      %p267 = por %p265, %p266
      %p268 = scmp.ne.s32.totalorder %s257, %s258
      %p269 = scmp.eq.s32.totalorder %s34, 0
      %p270 = por %p268, %p269
      %p271 = scmp.ne.s32.totalorder %s257, %s258
      %p272 = scmp.eq.s32.totalorder %s35, 1
      %p273 = por %p271, %p272
      %p275 = scmp.ne.s32.totalorder %s258, %s274
      %p276 = scmp.eq.s32.totalorder %s35, 0
      %p277 = por %p275, %p276
      %s278 = ssub.s32 %s29, %s36
      %p279 = scmp.eq.s32.totalorder %s278, 0
      %s281 = sadd.s32 %s280, 1
      %s282 = scalar_select %p279, %s280, %s281
      %p285 = pneg %p279
      %p286 = scmp.eq.s32.totalorder %s29, 1
      %p287 = por %p285, %p286
      %p288 = scmp.ne.s32.totalorder %s280, %s283
      %p289 = scmp.eq.s32.totalorder %s29, 0
      %p290 = por %p288, %p289
      %p291 = scmp.ne.s32.totalorder %s280, %s283
      %p292 = scmp.eq.s32.totalorder %s34, 1
      %p293 = por %p291, %p292
      %p294 = scmp.ne.s32.totalorder %s283, %s284
      %p295 = scmp.eq.s32.totalorder %s34, 0
      %p296 = por %p294, %p295
      %p297 = scmp.ne.s32.totalorder %s283, %s284
      %p298 = scmp.eq.s32.totalorder %s35, 1
      %p299 = por %p297, %p298
      %p301 = scmp.ne.s32.totalorder %s284, %s300
      %p302 = scmp.eq.s32.totalorder %s35, 0
      %p303 = por %p301, %p302
      %s304 = ssub.s32 %s29, %s36
      %p305 = scmp.eq.s32.totalorder %s304, 0
      %s307 = sadd.s32 %s306, 1
      %s308 = scalar_select %p305, %s306, %s307
      %p311 = pneg %p305
      %p312 = scmp.eq.s32.totalorder %s29, 1
      %p313 = por %p311, %p312
      %p314 = scmp.ne.s32.totalorder %s306, %s309
      %p315 = scmp.eq.s32.totalorder %s29, 0
      %p316 = por %p314, %p315
      %p317 = scmp.ne.s32.totalorder %s306, %s309
      %p318 = scmp.eq.s32.totalorder %s34, 1
      %p319 = por %p317, %p318
      %p320 = scmp.ne.s32.totalorder %s309, %s310
      %p321 = scmp.eq.s32.totalorder %s34, 0
      %p322 = por %p320, %p321
      %p323 = scmp.ne.s32.totalorder %s309, %s310
      %p324 = scmp.eq.s32.totalorder %s35, 1
      %p325 = por %p323, %p324
      %p327 = scmp.ne.s32.totalorder %s310, %s326
      %p328 = scmp.eq.s32.totalorder %s35, 0
      %p329 = por %p327, %p328
      %s330 = ssub.s32 %s29, %s36
      %p331 = scmp.eq.s32.totalorder %s330, 0
      %s333 = sadd.s32 %s332, 1
      %s334 = scalar_select %p331, %s332, %s333
      %p337 = pneg %p331
      %p338 = scmp.eq.s32.totalorder %s29, 1
      %p339 = por %p337, %p338
      %p340 = scmp.ne.s32.totalorder %s332, %s335
      %p341 = scmp.eq.s32.totalorder %s29, 0
      %p342 = por %p340, %p341
      %p343 = scmp.ne.s32.totalorder %s332, %s335
      %p344 = scmp.eq.s32.totalorder %s34, 1
      %p345 = por %p343, %p344
      %p346 = scmp.ne.s32.totalorder %s335, %s336
      %p347 = scmp.eq.s32.totalorder %s34, 0
      %p348 = por %p346, %p347
      %p349 = scmp.ne.s32.totalorder %s335, %s336
      %p350 = scmp.eq.s32.totalorder %s35, 1
      %p351 = por %p349, %p350
      %p353 = scmp.ne.s32.totalorder %s336, %s352
      %p354 = scmp.eq.s32.totalorder %s35, 0
      %p355 = por %p353, %p354
      %s356 = ssub.s32 %s29, %s36
      %p357 = scmp.eq.s32.totalorder %s356, 0
      %s359 = sadd.s32 %s358, 1
      %s360 = scalar_select %p357, %s358, %s359
      %p363 = pneg %p357
      %p364 = scmp.eq.s32.totalorder %s29, 1
      %p365 = por %p363, %p364
      %p366 = scmp.ne.s32.totalorder %s358, %s361
      %p367 = scmp.eq.s32.totalorder %s29, 0
      %p368 = por %p366, %p367
      %p369 = scmp.ne.s32.totalorder %s358, %s361
      %p370 = scmp.eq.s32.totalorder %s34, 1
      %p371 = por %p369, %p370
      %p372 = scmp.ne.s32.totalorder %s361, %s362
      %p373 = scmp.eq.s32.totalorder %s34, 0
      %p374 = por %p372, %p373
      %p375 = scmp.ne.s32.totalorder %s361, %s362
      %p376 = scmp.eq.s32.totalorder %s35, 1
      %p377 = por %p375, %p376
      %p379 = scmp.ne.s32.totalorder %s362, %s378
      %p380 = scmp.eq.s32.totalorder %s35, 0
      %p381 = por %p379, %p380
      %s382 = ssub.s32 %s29, %s36
      %p383 = scmp.eq.s32.totalorder %s382, 0
      %s385 = sadd.s32 %s384, 1
      %s386 = scalar_select %p383, %s384, %s385
      %p389 = pneg %p383
      %p390 = scmp.eq.s32.totalorder %s29, 1
      %p391 = por %p389, %p390
      %p392 = scmp.ne.s32.totalorder %s384, %s387
      %p393 = scmp.eq.s32.totalorder %s29, 0
      %p394 = por %p392, %p393
      %p395 = scmp.ne.s32.totalorder %s384, %s387
      %p396 = scmp.eq.s32.totalorder %s34, 1
      %p397 = por %p395, %p396
      %p398 = scmp.ne.s32.totalorder %s387, %s388
      %p399 = scmp.eq.s32.totalorder %s34, 0
      %p400 = por %p398, %p399
      %p401 = scmp.ne.s32.totalorder %s387, %s388
      %p402 = scmp.eq.s32.totalorder %s35, 1
      %p403 = por %p401, %p402
      %p405 = scmp.ne.s32.totalorder %s388, %s404
      %p406 = scmp.eq.s32.totalorder %s35, 0
      %p407 = por %p405, %p406
      %p408 = scmp.le.s32.totalorder 1, %s29
      %p409 = scmp.lt.s32.totalorder %s29, 3
      %p410 = pnand %p408, %p409
      %p411 = pneg %p410
      // Predicated region
      $region9: #{tpu_custom_call.1} parent=5 // pred_check
        _
      $region10: #{tpu_custom_call.1} parent=5 // pred_check_branch
        %413 = sbr.rel (%p410) target = $region12
      $region11: #{tpu_custom_call.1} parent=5 // pred_region
        %s414 = ssub.s32 %s29, 1
        // Predicated region
        $region13: #{tpu_custom_call.1} parent=11 // pred_check
          %p415 = pneg %p76
        $region14: #{tpu_custom_call.1} parent=11 // pred_check_branch
          %417 = sbr.rel (%p415) target = $region16
        $region15: #{tpu_custom_call.1} parent=11 // pred_region
          _
        $region16: #{tpu_custom_call.1} parent=11 // pred_fallthru
          _
        // Predicated region
        $region17: #{tpu_custom_call.1} parent=11 // pred_check
          %p418 = pneg %p97
        $region18: #{tpu_custom_call.1} parent=11 // pred_check_branch
          %420 = sbr.rel (%p418) target = $region20
        $region19: #{tpu_custom_call.1} parent=11 // pred_region
          _
        $region20: #{tpu_custom_call.1} parent=11 // pred_fallthru
          _
        // Predicated region
        $region21: #{tpu_custom_call.1} parent=11 // pred_check
          %p421 = pneg %p118
        $region22: #{tpu_custom_call.1} parent=11 // pred_check_branch
          %423 = sbr.rel (%p421) target = $region24
        $region23: #{tpu_custom_call.1} parent=11 // pred_region
          %425 = vsyncadd [#allocation5], 0
          %s426 = sshll.u32 %s3, 4
          %s427 = int_to_ptr.hbm [resolvable:$true] %s426
          %s428 = sshll.u32 [#allocation4], 4
          %s429 = int_to_ptr.vmem [resolvable:$true] %s428
          %434 = dma.hbm_to_vmem [thread:$0]  %s427, 2304, %s429, [#allocation5], 256, 256, 16
        $region24: #{tpu_custom_call.1} parent=11 // pred_fallthru
          _
        // Predicated region
        $region25: #{tpu_custom_call.1} parent=11 // pred_check
          %p435 = pneg %p139
        $region26: #{tpu_custom_call.1} parent=11 // pred_check_branch
          %437 = sbr.rel (%p435) target = $region28
        $region27: #{tpu_custom_call.1} parent=11 // pred_region
          %439 = vsyncadd [#allocation5], 0
          %s440 = sshll.u32 %s4, 4
          %s441 = int_to_ptr.hbm [resolvable:$true] %s440
          %s442 = sshll.u32 [#allocation6], 4
          %s443 = int_to_ptr.vmem [resolvable:$true] %s442
          %448 = dma.hbm_to_vmem [thread:$0]  %s441, 4096, %s443, [#allocation5], 128, 128, 8
        $region28: #{tpu_custom_call.1} parent=11 // pred_fallthru
          _
        // Predicated region
        $region29: #{tpu_custom_call.1} parent=11 // pred_check
          %p449 = pneg %p160
        $region30: #{tpu_custom_call.1} parent=11 // pred_check_branch
          %451 = sbr.rel (%p449) target = $region32
        $region31: #{tpu_custom_call.1} parent=11 // pred_region
          %453 = vsyncadd [#allocation8], 0
          %s454 = sshll.u32 %s5, 4
          %s455 = int_to_ptr.hbm [resolvable:$true] %s454
          %s456 = sshll.u32 [#allocation7], 4
          %s457 = int_to_ptr.vmem [resolvable:$true] %s456
          %462 = dma.hbm_to_vmem [thread:$0]  %s455, 4096, %s457, [#allocation8], 256, 256, 16
        $region32: #{tpu_custom_call.1} parent=11 // pred_fallthru
          _
        // Predicated region
        $region33: #{tpu_custom_call.1} parent=11 // pred_check
          %p463 = pneg %p181
        $region34: #{tpu_custom_call.1} parent=11 // pred_check_branch
          %465 = sbr.rel (%p463) target = $region36
        $region35: #{tpu_custom_call.1} parent=11 // pred_region
          %467 = vsyncadd [#allocation8], 0
          %s468 = sshll.u32 %s6, 4
          %s469 = int_to_ptr.hbm [resolvable:$true] %s468
          %s470 = sshll.u32 [#allocation9], 4
          %s471 = int_to_ptr.vmem [resolvable:$true] %s470
          %476 = dma.hbm_to_vmem [thread:$0]  %s469, 1152, %s471, [#allocation8], 128, 128, 8
        $region36: #{tpu_custom_call.1} parent=11 // pred_fallthru
          _
        // Predicated region
        $region37: #{tpu_custom_call.1} parent=11 // pred_check
          %p477 = pneg %p202
        $region38: #{tpu_custom_call.1} parent=11 // pred_check_branch
          %479 = sbr.rel (%p477) target = $region40
        $region39: #{tpu_custom_call.1} parent=11 // pred_region
          %481 = vsyncadd [#allocation11], 0
          %s482 = sshll.u32 %s7, 4
          %s483 = int_to_ptr.hbm [resolvable:$true] %s482
          %s484 = sshll.u32 [#allocation10], 4
          %s485 = int_to_ptr.vmem [resolvable:$true] %s484
          %490 = dma.hbm_to_vmem [thread:$0]  %s483, 8192, %s485, [#allocation11], 256, 256, 16
        $region40: #{tpu_custom_call.1} parent=11 // pred_fallthru
          _
        // Predicated region
        $region41: #{tpu_custom_call.1} parent=11 // pred_check
          %p491 = pneg %p223
        $region42: #{tpu_custom_call.1} parent=11 // pred_check_branch
          %493 = sbr.rel (%p491) target = $region44
        $region43: #{tpu_custom_call.1} parent=11 // pred_region
          %495 = vsyncadd [#allocation11], 0
          %s496 = sshll.u32 %s8, 4
          %s497 = int_to_ptr.hbm [resolvable:$true] %s496
          %s498 = sshll.u32 [#allocation12], 4
          %s499 = int_to_ptr.vmem [resolvable:$true] %s498
          %504 = dma.hbm_to_vmem [thread:$0]  %s497, 8192, %s499, [#allocation11], 256, 256, 16
        $region44: #{tpu_custom_call.1} parent=11 // pred_fallthru
          _
        // Predicated region
        $region45: #{tpu_custom_call.1} parent=11 // pred_check
          %p505 = pneg %p244
        $region46: #{tpu_custom_call.1} parent=11 // pred_check_branch
          %507 = sbr.rel (%p505) target = $region48
        $region47: #{tpu_custom_call.1} parent=11 // pred_region
          %509 = vsyncadd [#allocation14], 0
          %s510 = sshll.u32 %s9, 4
          %s511 = int_to_ptr.hbm [resolvable:$true] %s510
          %s512 = sshll.u32 [#allocation13], 4
          %s513 = int_to_ptr.vmem [resolvable:$true] %s512
          %518 = dma.hbm_to_vmem [thread:$0]  %s511, 2304, %s513, [#allocation14], 256, 256, 16
        $region48: #{tpu_custom_call.1} parent=11 // pred_fallthru
          _
      $region12: #{tpu_custom_call.1} parent=5 // pred_fallthru
        _
      %p519 = scmp.lt.s32.totalorder %s29, 2
      // Predicated region
      $region49: #{tpu_custom_call.1} parent=5 // pred_check
        %p520 = pneg %p519
      $region50: #{tpu_custom_call.1} parent=5 // pred_check_branch
        %522 = sbr.rel (%p520) target = $region52
      $region51: #{tpu_custom_call.1} parent=5 // pred_region
        // Predicated region
        $region53: #{tpu_custom_call.1} parent=51 // pred_check
          %p523 = pneg %p49
        $region54: #{tpu_custom_call.1} parent=51 // pred_check_branch
          %525 = sbr.rel (%p523) target = $region56
        $region55: #{tpu_custom_call.1} parent=51 // pred_region
          %s526 = sand.u32 %s39, 1
          %s527 = scalar_lea.sflag [#allocation3], %s526
          %s528 = sand.u32 %s39, 1
          %s529 = smul.addr %s528, 16
          %s530 = scalar_lea.vmem [#allocation2], %s529
          %532 = vsyncadd %s527, 0
          %s533 = smul.addr %s29, 2
          %s534 = smul.addr %s533, 8
          %s535 = scalar_lea.hbm %s0, %s534
          %s537 = sshll.u32 %s535, 4
          %s538 = int_to_ptr.hbm [resolvable:$true] %s537
          %s539 = sshll.u32 %s530, 4
          %s540 = int_to_ptr.vmem [resolvable:$true] %s539
          %542 = dma.hbm_to_vmem [thread:$0]  %s538, 256, %s540, %s527
        $region56: #{tpu_custom_call.1} parent=51 // pred_fallthru
          _
      $region52: #{tpu_custom_call.1} parent=5 // pred_fallthru
        _
      %p543 = scmp.le.s32.totalorder 1, %s29
      %p544 = scmp.lt.s32.totalorder %s29, 3
      %p545 = pnand %p543, %p544
      %p546 = pneg %p545
      // Predicated region
      $region57: #{tpu_custom_call.1} parent=5 // pred_check
        _
      $region58: #{tpu_custom_call.1} parent=5 // pred_check_branch
        %548 = sbr.rel (%p545) target = $region60
      $region59: #{tpu_custom_call.1} parent=5 // pred_region
        %s549 = ssub.s32 %s29, 1
        %s550 = sand.u32 %s42, 1
        %s551 = scalar_lea.sflag [#allocation3], %s550
        %s552 = sand.u32 %s42, 1
        %s553 = smul.addr %s552, 16
        %s554 = scalar_lea.vmem [#allocation2], %s553
        // Predicated region
        $region61: #{tpu_custom_call.1} parent=59 // pred_check
          %p555 = pneg %p55
        $region62: #{tpu_custom_call.1} parent=59 // pred_check_branch
          %557 = sbr.rel (%p555) target = $region64
        $region63: #{tpu_custom_call.1} parent=59 // pred_region
          %559 = dma.done %s551, 256
        $region64: #{tpu_custom_call.1} parent=59 // pred_fallthru
          _
        // Predicated region
        $region65: #{tpu_custom_call.1} parent=59 // pred_check
          %p560 = pneg %p118
        $region66: #{tpu_custom_call.1} parent=59 // pred_check_branch
          %562 = sbr.rel (%p560) target = $region68
        $region67: #{tpu_custom_call.1} parent=59 // pred_region
          %564 = dma.done [#allocation5], 2304
        $region68: #{tpu_custom_call.1} parent=59 // pred_fallthru
          _
        // Predicated region
        $region69: #{tpu_custom_call.1} parent=59 // pred_check
          %p565 = pneg %p139
        $region70: #{tpu_custom_call.1} parent=59 // pred_check_branch
          %567 = sbr.rel (%p565) target = $region72
        $region71: #{tpu_custom_call.1} parent=59 // pred_region
          %569 = dma.done [#allocation5], 4096
        $region72: #{tpu_custom_call.1} parent=59 // pred_fallthru
          _
        // Predicated region
        $region73: #{tpu_custom_call.1} parent=59 // pred_check
          %p570 = pneg %p160
        $region74: #{tpu_custom_call.1} parent=59 // pred_check_branch
          %572 = sbr.rel (%p570) target = $region76
        $region75: #{tpu_custom_call.1} parent=59 // pred_region
          %574 = dma.done [#allocation8], 4096
        $region76: #{tpu_custom_call.1} parent=59 // pred_fallthru
          _
        // Predicated region
        $region77: #{tpu_custom_call.1} parent=59 // pred_check
          %p575 = pneg %p181
        $region78: #{tpu_custom_call.1} parent=59 // pred_check_branch
          %577 = sbr.rel (%p575) target = $region80
        $region79: #{tpu_custom_call.1} parent=59 // pred_region
          %579 = dma.done [#allocation8], 1152
        $region80: #{tpu_custom_call.1} parent=59 // pred_fallthru
          _
        // Predicated region
        $region81: #{tpu_custom_call.1} parent=59 // pred_check
          %p580 = pneg %p202
        $region82: #{tpu_custom_call.1} parent=59 // pred_check_branch
          %582 = sbr.rel (%p580) target = $region84
        $region83: #{tpu_custom_call.1} parent=59 // pred_region
          %584 = dma.done [#allocation11], 8192
        $region84: #{tpu_custom_call.1} parent=59 // pred_fallthru
          _
        // Predicated region
        $region85: #{tpu_custom_call.1} parent=59 // pred_check
          %p585 = pneg %p223
        $region86: #{tpu_custom_call.1} parent=59 // pred_check_branch
          %587 = sbr.rel (%p585) target = $region88
        $region87: #{tpu_custom_call.1} parent=59 // pred_region
          %589 = dma.done [#allocation11], 8192
        $region88: #{tpu_custom_call.1} parent=59 // pred_fallthru
          _
        // Predicated region
        $region89: #{tpu_custom_call.1} parent=59 // pred_check
          %p590 = pneg %p244
        $region90: #{tpu_custom_call.1} parent=59 // pred_check_branch
          %592 = sbr.rel (%p590) target = $region92
        $region91: #{tpu_custom_call.1} parent=59 // pred_region
          %594 = dma.done [#allocation14], 2304
        $region92: #{tpu_custom_call.1} parent=59 // pred_fallthru
          _
        %s595 = sand.u32 %s42, 1
        %s596 = scalar_lea.sflag [#allocation3], %s595
        %s597 = sand.u32 %s42, 1
        %s598 = smul.addr %s597, 16
        %s599 = scalar_lea.vmem [#allocation2], %s598
        %p600 = pneg %p55
        %p601 = pneg %p52
        %p602 = pneg %p76
        %p603 = pneg %p73
        %p604 = pneg %p97
        %p605 = pneg %p94
        %p606 = pneg %p118
        %p607 = pneg %p115
        %p608 = pneg %p139
        %p609 = pneg %p136
        %p610 = pneg %p160
        %p611 = pneg %p157
        %p612 = pneg %p181
        %p613 = pneg %p178
        %p614 = pneg %p202
        %p615 = pneg %p199
        %p616 = pneg %p223
        %p617 = pneg %p220
        %p618 = pneg %p244
        %p619 = pneg %p241
        %p620 = pneg %p270
        %p621 = pneg %p267
        %p622 = scmp.lt.s32.totalorder %s34, 1
        %s623 = scalar_select %p622, %s34, 1
        %s624 = smul.addr %s623, 2
        %s625 = smul.addr %s624, 8
        %s626 = scalar_lea.vmem %s10, %s625
        %p627 = pneg %p296
        %p628 = pneg %p293
        %p629 = scmp.lt.s32.totalorder %s34, 1
        %s630 = scalar_select %p629, %s34, 1
        %s631 = smul.addr %s630, 2
        %s632 = smul.addr %s631, 8
        %s633 = scalar_lea.vmem %s11, %s632
        %p634 = pneg %p322
        %p635 = pneg %p319
        %p636 = scmp.lt.s32.totalorder %s34, 1
        %s637 = scalar_select %p636, %s34, 1
        %s638 = smul.addr %s637, 2
        %s639 = smul.addr %s638, 8
        %s640 = scalar_lea.vmem %s12, %s639
        %p641 = pneg %p348
        %p642 = pneg %p345
        %p643 = scmp.lt.s32.totalorder %s34, 1
        %s644 = scalar_select %p643, %s34, 1
        %s645 = smul.addr %s644, 2
        %s646 = smul.addr %s645, 8
        %s647 = scalar_lea.vmem %s13, %s646
        %p648 = pneg %p374
        %p649 = pneg %p371
        %p650 = scmp.lt.s32.totalorder %s34, 1
        %s651 = scalar_select %p650, %s34, 1
        %s652 = smul.addr %s651, 2
        %s653 = smul.addr %s652, 8
        %s654 = scalar_lea.vmem %s14, %s653
        %p655 = pneg %p400
        %p656 = pneg %p397
        %p657 = scmp.lt.s32.totalorder %s34, 1
        %s658 = scalar_select %p657, %s34, 1
        %s659 = smul.addr %s658, 2
        %s660 = smul.addr %s659, 8
        %s661 = scalar_lea.vmem %s15, %s660
        %p662 = scmp.lt.s32.totalorder %s34, 1
        %s663 = scalar_select %p662, %s34, 1
        %s664 = smul.addr %s663, 2
        %s665 = smul.addr %s664, 8
        %s666 = scalar_lea.vmem %s10, %s665
        %p667 = scmp.lt.s32.totalorder %s34, 1
        %s668 = scalar_select %p667, %s34, 1
        %s669 = smul.addr %s668, 2
        %s670 = smul.addr %s669, 8
        %s671 = scalar_lea.vmem %s11, %s670
        %p672 = scmp.lt.s32.totalorder %s34, 1
        %s673 = scalar_select %p672, %s34, 1
        %s674 = smul.addr %s673, 2
        %s675 = smul.addr %s674, 8
        %s676 = scalar_lea.vmem %s12, %s675
        %p677 = scmp.lt.s32.totalorder %s34, 1
        %s678 = scalar_select %p677, %s34, 1
        %s679 = smul.addr %s678, 2
        %s680 = smul.addr %s679, 8
        %s681 = scalar_lea.vmem %s13, %s680
        %p682 = scmp.lt.s32.totalorder %s34, 1
        %s683 = scalar_select %p682, %s34, 1
        %s684 = smul.addr %s683, 2
        %s685 = smul.addr %s684, 8
        %s686 = scalar_lea.vmem %s14, %s685
        %p687 = scmp.lt.s32.totalorder %s34, 1
        %s688 = scalar_select %p687, %s34, 1
        %s689 = smul.addr %s688, 2
        %s690 = smul.addr %s689, 8
        %s691 = scalar_lea.vmem %s15, %s690
        %v692 = vld [vmem:[%s554] sm:$0xff]
        %v693 = vld [vmem:[%s554 + $0x8] sm:$0xff]
        %v694 = vld [vmem:[%s1] sm:$0xff]
        %v695 = vld [vmem:[%s1 + $0x8] sm:$0xf]
        %v696 = vld [vmem:[%s2] sm:$0xff]
        %v697 = vld [vmem:[%s2 + $0x8] sm:$0xf]
        %698 = vrot.lane.b32.xlu0 %v692, 17
        %v699 = vpop.permute.xlu0 %698
        %700 = vrot.lane.b32.xlu0 %v693, 17
        %v701 = vpop.permute.xlu0 %700
        %v702 = vlaneseq
        %v703 = vand.u32 %v702, 127
        %vm704 = vcmp.lt.s32.totalorder %v703, 17
        %v705 = vsel %vm704, %v699, %v701
        %v706 = vsel %vm704, %v701, %v699
        %707 = vrot.lane.b32.xlu0 %v692, 16
        %v708 = vpop.permute.xlu0 %707
        %709 = vrot.lane.b32.xlu0 %v693, 16
        %v710 = vpop.permute.xlu0 %709
        %vm711 = vcmp.lt.s32.totalorder %v703, 16
        %v712 = vsel %vm711, %v708, %v710
        %v713 = vsel %vm711, %v710, %v708
        %714 = vrot.lane.b32.xlu0 %v692, 15
        %v715 = vpop.permute.xlu0 %714
        %716 = vrot.lane.b32.xlu0 %v693, 15
        %v717 = vpop.permute.xlu0 %716
        %vm718 = vcmp.lt.s32.totalorder %v703, 15
        %v719 = vsel %vm718, %v715, %v717
        %v720 = vsel %vm718, %v717, %v715
        %721 = vrot.lane.b32.xlu0 %v692, 1
        %v722 = vpop.permute.xlu0 %721
        %723 = vrot.lane.b32.xlu0 %v693, 1
        %v724 = vpop.permute.xlu0 %723
        %vm725 = vcmp.lt.s32.totalorder %v703, 1
        %v726 = vsel %vm725, %v722, %v724
        %v727 = vsel %vm725, %v724, %v722
        %728 = vrot.lane.b32.xlu0 %v692, 127
        %v729 = vpop.permute.xlu0 %728
        %730 = vrot.lane.b32.xlu0 %v693, 127
        %v731 = vpop.permute.xlu0 %730
        %vm732 = vcmp.lt.s32.totalorder %v703, 127
        %v733 = vsel %vm732, %v729, %v731
        %v734 = vsel %vm732, %v731, %v729
        %735 = vrot.lane.b32.xlu0 %v692, 113
        %v736 = vpop.permute.xlu0 %735
        %737 = vrot.lane.b32.xlu0 %v693, 113
        %v738 = vpop.permute.xlu0 %737
        %vm739 = vcmp.lt.s32.totalorder %v703, 113
        %v740 = vsel %vm739, %v736, %v738
        %v741 = vsel %vm739, %v738, %v736
        %742 = vrot.lane.b32.xlu0 %v692, 112
        %v743 = vpop.permute.xlu0 %742
        %744 = vrot.lane.b32.xlu0 %v693, 112
        %v745 = vpop.permute.xlu0 %744
        %vm746 = vcmp.lt.s32.totalorder %v703, 112
        %v747 = vsel %vm746, %v743, %v745
        %v748 = vsel %vm746, %v745, %v743
        %749 = vrot.lane.b32.xlu0 %v692, 111
        %v750 = vpop.permute.xlu0 %749
        %751 = vrot.lane.b32.xlu0 %v693, 111
        %v752 = vpop.permute.xlu0 %751
        %vm753 = vcmp.lt.s32.totalorder %v703, 111
        %v754 = vsel %vm753, %v750, %v752
        %v755 = vsel %vm753, %v752, %v750
        %v756 = vld [vmem:[#allocation4] sm:$0xff]
        %v757 = vld [vmem:[#allocation4 + $0x8] sm:$0xff]
        %v758 = vld [vmem:[#allocation4 + $0x10] sm:$0xff]
        %v759 = vld [vmem:[#allocation4 + $0x18] sm:$0xff]
        %v760 = vld [vmem:[#allocation4 + $0x20] sm:$0xff]
        %v761 = vld [vmem:[#allocation4 + $0x28] sm:$0xff]
        %v762 = vld [vmem:[#allocation4 + $0x30] sm:$0xff]
        %v763 = vld [vmem:[#allocation4 + $0x38] sm:$0xff]
        %v764 = vld [vmem:[#allocation4 + $0x40] sm:$0xff]
        %v765 = vld [vmem:[#allocation4 + $0x48] sm:$0xff]
        %v766 = vld [vmem:[#allocation4 + $0x50] sm:$0xff]
        %v767 = vld [vmem:[#allocation4 + $0x58] sm:$0xff]
        %v768 = vld [vmem:[#allocation4 + $0x60] sm:$0xff]
        %v769 = vld [vmem:[#allocation4 + $0x68] sm:$0xff]
        %v770 = vld [vmem:[#allocation4 + $0x70] sm:$0xff]
        %v771 = vld [vmem:[#allocation4 + $0x78] sm:$0xff]
        %v772 = vld [vmem:[#allocation4 + $0x80] sm:$0xff]
        %v773 = vld [vmem:[#allocation4 + $0x88] sm:$0xff]
        %v774 = vmul.f32 %v706, %v756
        %v775 = vmul.f32 %v705, %v757
        %v776 = vmul.f32 %v713, %v758
        %v777 = vmul.f32 %v712, %v759
        %v778 = vmul.f32 %v720, %v760
        %v779 = vmul.f32 %v719, %v761
        %v780 = vmul.f32 %v727, %v762
        %v781 = vmul.f32 %v726, %v763
        %v782 = vmul.f32 %v692, %v764
        %v783 = vmul.f32 %v693, %v765
        %v784 = vmul.f32 %v733, %v766
        %v785 = vmul.f32 %v734, %v767
        %v786 = vmul.f32 %v740, %v768
        %v787 = vmul.f32 %v741, %v769
        %v788 = vmul.f32 %v747, %v770
        %v789 = vmul.f32 %v748, %v771
        %v790 = vmul.f32 %v754, %v772
        %v791 = vmul.f32 %v755, %v773
        %793 = vset.pattern.permute.xlu0 0
        %794 = vperm.xlu0 %793, %v696
        %v795 = vpop.permute.xlu0 %794
        %798 = vset.pattern.permute.xlu0 0
        %799 = vperm.xlu0 %798, %v697
        %v800 = vpop.permute.xlu0 %799
        %vm802 = vcmask 588800
        %v804 = vsel %vm802, %v694, 0
        %v807 = vsel %vm802, %v695, 0
        %809 = vmatpush.msra.mxu0 0.0
        %810 = vmatpush.msra.mxu0 0.0
        %811 = vmatpush.msra.mxu0 0.0
        %812 = vmatpush.msra.mxu0 0.0
        %813 = vmatpush.msra.mxu0 0.0
        %814 = vmatpush.msra.mxu0 0.0
        %815 = vmatpush.msra.mxu0 0.0
        %816 = vmatpush.msra.mxu0 %v790
        %817 = vmatpush.msra.mxu0 %v788
        %818 = vmatpush.msra.mxu0 %v786
        %819 = vmatpush.msra.mxu0 %v784
        %820 = vmatpush.msra.mxu0 %v782
        %821 = vmatpush.msra.mxu0 %v780
        %822 = vmatpush.msra.mxu0 %v778
        %823 = vmatpush.msra.mxu0 %v776
        %824 = vmatpush.msra.mxu0 %v774
        %825 = vmatmul.f32.gmra.mxu0 %v804
        %v826 = vpop.f32.mrf.mxu0
        %v827 = vadd.f32 %v795, %v826
        %828 = vmatmul.f32.gmra.mxu0 %v807
        %v829 = vpop.f32.mrf.mxu0
        %v830 = vadd.f32 %v800, %v829
        %831 = vdwg.mxu0
        %832 = vmatpush.msra.mxu0 0.0
        %833 = vmatpush.msra.mxu0 0.0
        %834 = vmatpush.msra.mxu0 0.0
        %835 = vmatpush.msra.mxu0 0.0
        %836 = vmatpush.msra.mxu0 0.0
        %837 = vmatpush.msra.mxu0 0.0
        %838 = vmatpush.msra.mxu0 0.0
        %839 = vmatpush.msra.mxu0 %v791
        %840 = vmatpush.msra.mxu0 %v789
        %841 = vmatpush.msra.mxu0 %v787
        %842 = vmatpush.msra.mxu0 %v785
        %843 = vmatpush.msra.mxu0 %v783
        %844 = vmatpush.msra.mxu0 %v781
        %845 = vmatpush.msra.mxu0 %v779
        %846 = vmatpush.msra.mxu0 %v777
        %847 = vmatpush.msra.mxu0 %v775
        %848 = vmatmul.f32.gmra.mxu0 %v804
        %v849 = vpop.f32.mrf.mxu0
        %v850 = vadd.f32 %v795, %v849
        %851 = vmatmul.f32.gmra.mxu0 %v807
        %v852 = vpop.f32.mrf.mxu0
        %v853 = vadd.f32 %v800, %v852
        %854 = vdwg.mxu0
        %855 = vst [vmem:[%s666] sm:$0x3f] %v827
        %856 = vst [vmem:[%s666 + $0x8] sm:$0x3f] %v850
        %vm861 = vcmask 1041408
        %v862 = vrot.slane %v827, 6
        %v863 = vrot.slane %v830, 6
        %v864 = vsel %vm861, %v862, %v863
        %v865 = vrot.slane %v850, 6
        %v866 = vrot.slane %v853, 6
        %v867 = vsel %vm861, %v865, %v866
        %870 = vst [vmem:[%s671] sm:$0x3f] %v864
        %871 = vst [vmem:[%s671 + $0x8] sm:$0x3f] %v867
        %v872 = vld [vmem:[#allocation6] sm:$0xff]
        %v873 = vld [vmem:[#allocation6 + $0x8] sm:$0xff]
        %v874 = vld [vmem:[#allocation6 + $0x10] sm:$0xff]
        %v875 = vld [vmem:[#allocation6 + $0x18] sm:$0xff]
        %v876 = vld [vmem:[#allocation6 + $0x20] sm:$0xff]
        %v877 = vld [vmem:[#allocation6 + $0x28] sm:$0xff]
        %v878 = vld [vmem:[#allocation6 + $0x30] sm:$0xff]
        %v879 = vld [vmem:[#allocation6 + $0x38] sm:$0xff]
        %v880 = vld [vmem:[#allocation6 + $0x40] sm:$0xff]
        %v881 = vld [vmem:[#allocation6 + $0x48] sm:$0xff]
        %v882 = vld [vmem:[#allocation6 + $0x50] sm:$0xff]
        %v883 = vld [vmem:[#allocation6 + $0x58] sm:$0xff]
        %v884 = vld [vmem:[#allocation6 + $0x60] sm:$0xff]
        %v885 = vld [vmem:[#allocation6 + $0x68] sm:$0xff]
        %v886 = vld [vmem:[#allocation6 + $0x70] sm:$0xff]
        %v887 = vld [vmem:[#allocation6 + $0x78] sm:$0xff]
        %v888 = vld [vmem:[#allocation6 + $0x80] sm:$0xff]
        %v889 = vld [vmem:[#allocation6 + $0x88] sm:$0xff]
        %v890 = vld [vmem:[#allocation6 + $0x90] sm:$0xff]
        %v891 = vld [vmem:[#allocation6 + $0x98] sm:$0xff]
        %v892 = vld [vmem:[#allocation6 + $0xa0] sm:$0xff]
        %v893 = vld [vmem:[#allocation6 + $0xa8] sm:$0xff]
        %v894 = vld [vmem:[#allocation6 + $0xb0] sm:$0xff]
        %v895 = vld [vmem:[#allocation6 + $0xb8] sm:$0xff]
        %v896 = vld [vmem:[#allocation6 + $0xc0] sm:$0xff]
        %v897 = vld [vmem:[#allocation6 + $0xc8] sm:$0xff]
        %v898 = vld [vmem:[#allocation6 + $0xd0] sm:$0xff]
        %v899 = vld [vmem:[#allocation6 + $0xd8] sm:$0xff]
        %v900 = vld [vmem:[#allocation6 + $0xe0] sm:$0xff]
        %v901 = vld [vmem:[#allocation6 + $0xe8] sm:$0xff]
        %v902 = vld [vmem:[#allocation6 + $0xf0] sm:$0xff]
        %v903 = vld [vmem:[#allocation6 + $0xf8] sm:$0xff]
        %904 = vmatpush.msra.mxu0 %v887
        %905 = vmatpush.msra.mxu0 %v886
        %906 = vmatpush.msra.mxu0 %v885
        %907 = vmatpush.msra.mxu0 %v884
        %908 = vmatpush.msra.mxu0 %v883
        %909 = vmatpush.msra.mxu0 %v882
        %910 = vmatpush.msra.mxu0 %v881
        %911 = vmatpush.msra.mxu0 %v880
        %912 = vmatpush.msra.mxu0 %v879
        %913 = vmatpush.msra.mxu0 %v878
        %914 = vmatpush.msra.mxu0 %v877
        %915 = vmatpush.msra.mxu0 %v876
        %916 = vmatpush.msra.mxu0 %v875
        %917 = vmatpush.msra.mxu0 %v874
        %918 = vmatpush.msra.mxu0 %v873
        %919 = vmatpush.msra.mxu0 %v872
        %920 = vmatmul.f32.gmra.mxu0 %v692
        %v921 = vpop.f32.mrf.mxu0
        %v922 = vadd.f32 0.0, %v921
        %923 = vdwg.mxu0
        %924 = vmatpush.msra.mxu0 %v903
        %925 = vmatpush.msra.mxu0 %v902
        %926 = vmatpush.msra.mxu0 %v901
        %927 = vmatpush.msra.mxu0 %v900
        %928 = vmatpush.msra.mxu0 %v899
        %929 = vmatpush.msra.mxu0 %v898
        %930 = vmatpush.msra.mxu0 %v897
        %931 = vmatpush.msra.mxu0 %v896
        %932 = vmatpush.msra.mxu0 %v895
        %933 = vmatpush.msra.mxu0 %v894
        %934 = vmatpush.msra.mxu0 %v893
        %935 = vmatpush.msra.mxu0 %v892
        %936 = vmatpush.msra.mxu0 %v891
        %937 = vmatpush.msra.mxu0 %v890
        %938 = vmatpush.msra.mxu0 %v889
        %939 = vmatpush.msra.mxu0 %v888
        %940 = vmatmul.f32.gmra.mxu0 %v693
        %v941 = vpop.f32.mrf.mxu0
        %v942 = vadd.f32 %v922, %v941
        %943 = vdwg.mxu0
        %944 = vrot.lane.b32.xlu0 %v942, 9
        %v945 = vpop.permute.xlu0 %944
        %946 = vrot.lane.b32.xlu0 %v942, 8
        %v947 = vpop.permute.xlu0 %946
        %948 = vrot.lane.b32.xlu0 %v942, 7
        %v949 = vpop.permute.xlu0 %948
        %950 = vrot.lane.b32.xlu0 %v942, 1
        %v951 = vpop.permute.xlu0 %950
        %952 = vrot.lane.b32.xlu0 %v942, 127
        %v953 = vpop.permute.xlu0 %952
        %954 = vrot.lane.b32.xlu0 %v942, 121
        %v955 = vpop.permute.xlu0 %954
        %956 = vrot.lane.b32.xlu0 %v942, 120
        %v957 = vpop.permute.xlu0 %956
        %958 = vrot.lane.b32.xlu0 %v942, 119
        %v959 = vpop.permute.xlu0 %958
        %v960 = vld [vmem:[#allocation9] sm:$0xff]
        %v961 = vld [vmem:[#allocation9 + $0x8] sm:$0xff]
        %v962 = vld [vmem:[#allocation9 + $0x10] sm:$0xff]
        %v963 = vld [vmem:[#allocation9 + $0x18] sm:$0xff]
        %v964 = vld [vmem:[#allocation9 + $0x20] sm:$0xff]
        %v965 = vld [vmem:[#allocation9 + $0x28] sm:$0xff]
        %v966 = vld [vmem:[#allocation9 + $0x30] sm:$0xff]
        %v967 = vld [vmem:[#allocation9 + $0x38] sm:$0xff]
        %v968 = vld [vmem:[#allocation9 + $0x40] sm:$0xff]
        %v969 = vmul.f32 %v945, %v960
        %v970 = vmul.f32 %v947, %v961
        %v971 = vmul.f32 %v949, %v962
        %v972 = vmul.f32 %v951, %v963
        %v973 = vmul.f32 %v942, %v964
        %v974 = vmul.f32 %v953, %v965
        %v975 = vmul.f32 %v955, %v966
        %v976 = vmul.f32 %v957, %v967
        %v977 = vmul.f32 %v959, %v968
        %978 = vmatpush.msra.mxu0 0.0
        %979 = vmatpush.msra.mxu0 0.0
        %980 = vmatpush.msra.mxu0 0.0
        %981 = vmatpush.msra.mxu0 0.0
        %982 = vmatpush.msra.mxu0 0.0
        %983 = vmatpush.msra.mxu0 0.0
        %984 = vmatpush.msra.mxu0 0.0
        %985 = vmatpush.msra.mxu0 %v977
        %986 = vmatpush.msra.mxu0 %v976
        %987 = vmatpush.msra.mxu0 %v975
        %988 = vmatpush.msra.mxu0 %v974
        %989 = vmatpush.msra.mxu0 %v973
        %990 = vmatpush.msra.mxu0 %v972
        %991 = vmatpush.msra.mxu0 %v971
        %992 = vmatpush.msra.mxu0 %v970
        %993 = vmatpush.msra.mxu0 %v969
        %994 = vmatmul.f32.gmra.mxu0 %v804
        %v995 = vpop.f32.mrf.mxu0
        %v996 = vadd.f32 0.0, %v995
        %997 = vmatmul.f32.gmra.mxu0 %v807
        %v998 = vpop.f32.mrf.mxu0
        %v999 = vadd.f32 0.0, %v998
        %1000 = vdwg.mxu0
        %v1001 = vld [vmem:[#allocation7] sm:$0xff]
        %v1002 = vld [vmem:[#allocation7 + $0x8] sm:$0xff]
        %v1003 = vld [vmem:[#allocation7 + $0x10] sm:$0xff]
        %v1004 = vld [vmem:[#allocation7 + $0x18] sm:$0xff]
        %v1005 = vld [vmem:[#allocation7 + $0x20] sm:$0xff]
        %v1006 = vld [vmem:[#allocation7 + $0x28] sm:$0xff]
        %v1007 = vld [vmem:[#allocation7 + $0x30] sm:$0xff]
        %v1008 = vld [vmem:[#allocation7 + $0x38] sm:$0xff]
        %v1009 = vld [vmem:[#allocation7 + $0x40] sm:$0xff]
        %v1010 = vld [vmem:[#allocation7 + $0x48] sm:$0xff]
        %v1011 = vld [vmem:[#allocation7 + $0x50] sm:$0xff]
        %v1012 = vld [vmem:[#allocation7 + $0x58] sm:$0xff]
        %v1013 = vld [vmem:[#allocation7 + $0x60] sm:$0xff]
        %v1014 = vld [vmem:[#allocation7 + $0x68] sm:$0xff]
        %v1015 = vld [vmem:[#allocation7 + $0x70] sm:$0xff]
        %v1016 = vld [vmem:[#allocation7 + $0x78] sm:$0xff]
        %v1017 = vld [vmem:[#allocation7 + $0x80] sm:$0xff]
        %v1018 = vld [vmem:[#allocation7 + $0x88] sm:$0xff]
        %v1019 = vld [vmem:[#allocation7 + $0x90] sm:$0xff]
        %v1020 = vld [vmem:[#allocation7 + $0x98] sm:$0xff]
        %v1021 = vld [vmem:[#allocation7 + $0xa0] sm:$0xff]
        %v1022 = vld [vmem:[#allocation7 + $0xa8] sm:$0xff]
        %v1023 = vld [vmem:[#allocation7 + $0xb0] sm:$0xff]
        %v1024 = vld [vmem:[#allocation7 + $0xb8] sm:$0xff]
        %v1025 = vld [vmem:[#allocation7 + $0xc0] sm:$0xff]
        %v1026 = vld [vmem:[#allocation7 + $0xc8] sm:$0xff]
        %v1027 = vld [vmem:[#allocation7 + $0xd0] sm:$0xff]
        %v1028 = vld [vmem:[#allocation7 + $0xd8] sm:$0xff]
        %v1029 = vld [vmem:[#allocation7 + $0xe0] sm:$0xff]
        %v1030 = vld [vmem:[#allocation7 + $0xe8] sm:$0xff]
        %v1031 = vld [vmem:[#allocation7 + $0xf0] sm:$0xff]
        %v1032 = vld [vmem:[#allocation7 + $0xf8] sm:$0xff]
        %1033 = vmatpush.msra.mxu0 %v1031
        %1034 = vmatpush.msra.mxu0 %v1029
        %1035 = vmatpush.msra.mxu0 %v1027
        %1036 = vmatpush.msra.mxu0 %v1025
        %1037 = vmatpush.msra.mxu0 %v1023
        %1038 = vmatpush.msra.mxu0 %v1021
        %1039 = vmatpush.msra.mxu0 %v1019
        %1040 = vmatpush.msra.mxu0 %v1017
        %1041 = vmatpush.msra.mxu0 %v1015
        %1042 = vmatpush.msra.mxu0 %v1013
        %1043 = vmatpush.msra.mxu0 %v1011
        %1044 = vmatpush.msra.mxu0 %v1009
        %1045 = vmatpush.msra.mxu0 %v1007
        %1046 = vmatpush.msra.mxu0 %v1005
        %1047 = vmatpush.msra.mxu0 %v1003
        %1048 = vmatpush.msra.mxu0 %v1001
        %1049 = vmatmul.f32.gmra.mxu0 %v996
        %v1050 = vpop.f32.mrf.mxu0
        %v1051 = vadd.f32 %v795, %v1050
        %1052 = vmatmul.f32.gmra.mxu0 %v999
        %v1053 = vpop.f32.mrf.mxu0
        %v1054 = vadd.f32 %v800, %v1053
        %1055 = vdwg.mxu0
        %1056 = vmatpush.msra.mxu0 %v1032
        %1057 = vmatpush.msra.mxu0 %v1030
        %1058 = vmatpush.msra.mxu0 %v1028
        %1059 = vmatpush.msra.mxu0 %v1026
        %1060 = vmatpush.msra.mxu0 %v1024
        %1061 = vmatpush.msra.mxu0 %v1022
        %1062 = vmatpush.msra.mxu0 %v1020
        %1063 = vmatpush.msra.mxu0 %v1018
        %1064 = vmatpush.msra.mxu0 %v1016
        %1065 = vmatpush.msra.mxu0 %v1014
        %1066 = vmatpush.msra.mxu0 %v1012
        %1067 = vmatpush.msra.mxu0 %v1010
        %1068 = vmatpush.msra.mxu0 %v1008
        %1069 = vmatpush.msra.mxu0 %v1006
        %1070 = vmatpush.msra.mxu0 %v1004
        %1071 = vmatpush.msra.mxu0 %v1002
        %1072 = vmatmul.f32.gmra.mxu0 %v996
        %v1073 = vpop.f32.mrf.mxu0
        %v1074 = vadd.f32 %v795, %v1073
        %1075 = vmatmul.f32.gmra.mxu0 %v999
        %v1076 = vpop.f32.mrf.mxu0
        %v1077 = vadd.f32 %v800, %v1076
        %1078 = vdwg.mxu0
        %1079 = vst [vmem:[%s676] sm:$0x3f] %v1051
        %1080 = vst [vmem:[%s676 + $0x8] sm:$0x3f] %v1074
        %v1085 = vrot.slane %v1051, 6
        %v1086 = vrot.slane %v1054, 6
        %v1087 = vsel %vm861, %v1085, %v1086
        %v1088 = vrot.slane %v1074, 6
        %v1089 = vrot.slane %v1077, 6
        %v1090 = vsel %vm861, %v1088, %v1089
        %1093 = vst [vmem:[%s681] sm:$0x3f] %v1087
        %1094 = vst [vmem:[%s681 + $0x8] sm:$0x3f] %v1090
        %v1095 = vld [vmem:[#allocation10] sm:$0xff]
        %v1096 = vld [vmem:[#allocation10 + $0x8] sm:$0xff]
        %v1097 = vld [vmem:[#allocation10 + $0x10] sm:$0xff]
        %v1098 = vld [vmem:[#allocation10 + $0x18] sm:$0xff]
        %v1099 = vld [vmem:[#allocation10 + $0x20] sm:$0xff]
        %v1100 = vld [vmem:[#allocation10 + $0x28] sm:$0xff]
        %v1101 = vld [vmem:[#allocation10 + $0x30] sm:$0xff]
        %v1102 = vld [vmem:[#allocation10 + $0x38] sm:$0xff]
        %v1103 = vld [vmem:[#allocation10 + $0x40] sm:$0xff]
        %v1104 = vld [vmem:[#allocation10 + $0x48] sm:$0xff]
        %v1105 = vld [vmem:[#allocation10 + $0x50] sm:$0xff]
        %v1106 = vld [vmem:[#allocation10 + $0x58] sm:$0xff]
        %v1107 = vld [vmem:[#allocation10 + $0x60] sm:$0xff]
        %v1108 = vld [vmem:[#allocation10 + $0x68] sm:$0xff]
        %v1109 = vld [vmem:[#allocation10 + $0x70] sm:$0xff]
        %v1110 = vld [vmem:[#allocation10 + $0x78] sm:$0xff]
        %v1111 = vld [vmem:[#allocation10 + $0x80] sm:$0xff]
        %v1112 = vld [vmem:[#allocation10 + $0x88] sm:$0xff]
        %v1113 = vld [vmem:[#allocation10 + $0x90] sm:$0xff]
        %v1114 = vld [vmem:[#allocation10 + $0x98] sm:$0xff]
        %v1115 = vld [vmem:[#allocation10 + $0xa0] sm:$0xff]
        %v1116 = vld [vmem:[#allocation10 + $0xa8] sm:$0xff]
        %v1117 = vld [vmem:[#allocation10 + $0xb0] sm:$0xff]
        %v1118 = vld [vmem:[#allocation10 + $0xb8] sm:$0xff]
        %v1119 = vld [vmem:[#allocation10 + $0xc0] sm:$0xff]
        %v1120 = vld [vmem:[#allocation10 + $0xc8] sm:$0xff]
        %v1121 = vld [vmem:[#allocation10 + $0xd0] sm:$0xff]
        %v1122 = vld [vmem:[#allocation10 + $0xd8] sm:$0xff]
        %v1123 = vld [vmem:[#allocation10 + $0xe0] sm:$0xff]
        %v1124 = vld [vmem:[#allocation10 + $0xe8] sm:$0xff]
        %v1125 = vld [vmem:[#allocation10 + $0xf0] sm:$0xff]
        %v1126 = vld [vmem:[#allocation10 + $0xf8] sm:$0xff]
        %v1127 = vld [vmem:[#allocation10 + $0x100] sm:$0xff]
        %v1128 = vld [vmem:[#allocation10 + $0x108] sm:$0xff]
        %v1129 = vld [vmem:[#allocation10 + $0x110] sm:$0xff]
        %v1130 = vld [vmem:[#allocation10 + $0x118] sm:$0xff]
        %v1131 = vld [vmem:[#allocation10 + $0x120] sm:$0xff]
        %v1132 = vld [vmem:[#allocation10 + $0x128] sm:$0xff]
        %v1133 = vld [vmem:[#allocation10 + $0x130] sm:$0xff]
        %v1134 = vld [vmem:[#allocation10 + $0x138] sm:$0xff]
        %v1135 = vld [vmem:[#allocation10 + $0x140] sm:$0xff]
        %v1136 = vld [vmem:[#allocation10 + $0x148] sm:$0xff]
        %v1137 = vld [vmem:[#allocation10 + $0x150] sm:$0xff]
        %v1138 = vld [vmem:[#allocation10 + $0x158] sm:$0xff]
        %v1139 = vld [vmem:[#allocation10 + $0x160] sm:$0xff]
        %v1140 = vld [vmem:[#allocation10 + $0x168] sm:$0xff]
        %v1141 = vld [vmem:[#allocation10 + $0x170] sm:$0xff]
        %v1142 = vld [vmem:[#allocation10 + $0x178] sm:$0xff]
        %v1143 = vld [vmem:[#allocation10 + $0x180] sm:$0xff]
        %v1144 = vld [vmem:[#allocation10 + $0x188] sm:$0xff]
        %v1145 = vld [vmem:[#allocation10 + $0x190] sm:$0xff]
        %v1146 = vld [vmem:[#allocation10 + $0x198] sm:$0xff]
        %v1147 = vld [vmem:[#allocation10 + $0x1a0] sm:$0xff]
        %v1148 = vld [vmem:[#allocation10 + $0x1a8] sm:$0xff]
        %v1149 = vld [vmem:[#allocation10 + $0x1b0] sm:$0xff]
        %v1150 = vld [vmem:[#allocation10 + $0x1b8] sm:$0xff]
        %v1151 = vld [vmem:[#allocation10 + $0x1c0] sm:$0xff]
        %v1152 = vld [vmem:[#allocation10 + $0x1c8] sm:$0xff]
        %v1153 = vld [vmem:[#allocation10 + $0x1d0] sm:$0xff]
        %v1154 = vld [vmem:[#allocation10 + $0x1d8] sm:$0xff]
        %v1155 = vld [vmem:[#allocation10 + $0x1e0] sm:$0xff]
        %v1156 = vld [vmem:[#allocation10 + $0x1e8] sm:$0xff]
        %v1157 = vld [vmem:[#allocation10 + $0x1f0] sm:$0xff]
        %v1158 = vld [vmem:[#allocation10 + $0x1f8] sm:$0xff]
        %1159 = vmatpush.msra.mxu0 %v1125
        %1160 = vmatpush.msra.mxu0 %v1123
        %1161 = vmatpush.msra.mxu0 %v1121
        %1162 = vmatpush.msra.mxu0 %v1119
        %1163 = vmatpush.msra.mxu0 %v1117
        %1164 = vmatpush.msra.mxu0 %v1115
        %1165 = vmatpush.msra.mxu0 %v1113
        %1166 = vmatpush.msra.mxu0 %v1111
        %1167 = vmatpush.msra.mxu0 %v1109
        %1168 = vmatpush.msra.mxu0 %v1107
        %1169 = vmatpush.msra.mxu0 %v1105
        %1170 = vmatpush.msra.mxu0 %v1103
        %1171 = vmatpush.msra.mxu0 %v1101
        %1172 = vmatpush.msra.mxu0 %v1099
        %1173 = vmatpush.msra.mxu0 %v1097
        %1174 = vmatpush.msra.mxu0 %v1095
        %1175 = vmatmul.f32.gmra.mxu0 %v692
        %v1176 = vpop.f32.mrf.mxu0
        %v1177 = vadd.f32 0.0, %v1176
        %1178 = vdwg.mxu0
        %1179 = vmatpush.msra.mxu0 %v1157
        %1180 = vmatpush.msra.mxu0 %v1155
        %1181 = vmatpush.msra.mxu0 %v1153
        %1182 = vmatpush.msra.mxu0 %v1151
        %1183 = vmatpush.msra.mxu0 %v1149
        %1184 = vmatpush.msra.mxu0 %v1147
        %1185 = vmatpush.msra.mxu0 %v1145
        %1186 = vmatpush.msra.mxu0 %v1143
        %1187 = vmatpush.msra.mxu0 %v1141
        %1188 = vmatpush.msra.mxu0 %v1139
        %1189 = vmatpush.msra.mxu0 %v1137
        %1190 = vmatpush.msra.mxu0 %v1135
        %1191 = vmatpush.msra.mxu0 %v1133
        %1192 = vmatpush.msra.mxu0 %v1131
        %1193 = vmatpush.msra.mxu0 %v1129
        %1194 = vmatpush.msra.mxu0 %v1127
        %1195 = vmatmul.f32.gmra.mxu0 %v693
        %v1196 = vpop.f32.mrf.mxu0
        %v1197 = vadd.f32 %v1177, %v1196
        %1198 = vdwg.mxu0
        %1199 = vmatpush.msra.mxu0 %v1126
        %1200 = vmatpush.msra.mxu0 %v1124
        %1201 = vmatpush.msra.mxu0 %v1122
        %1202 = vmatpush.msra.mxu0 %v1120
        %1203 = vmatpush.msra.mxu0 %v1118
        %1204 = vmatpush.msra.mxu0 %v1116
        %1205 = vmatpush.msra.mxu0 %v1114
        %1206 = vmatpush.msra.mxu0 %v1112
        %1207 = vmatpush.msra.mxu0 %v1110
        %1208 = vmatpush.msra.mxu0 %v1108
        %1209 = vmatpush.msra.mxu0 %v1106
        %1210 = vmatpush.msra.mxu0 %v1104
        %1211 = vmatpush.msra.mxu0 %v1102
        %1212 = vmatpush.msra.mxu0 %v1100
        %1213 = vmatpush.msra.mxu0 %v1098
        %1214 = vmatpush.msra.mxu0 %v1096
        %1215 = vmatmul.f32.gmra.mxu0 %v692
        %v1216 = vpop.f32.mrf.mxu0
        %v1217 = vadd.f32 0.0, %v1216
        %1218 = vdwg.mxu0
        %1219 = vmatpush.msra.mxu0 %v1158
        %1220 = vmatpush.msra.mxu0 %v1156
        %1221 = vmatpush.msra.mxu0 %v1154
        %1222 = vmatpush.msra.mxu0 %v1152
        %1223 = vmatpush.msra.mxu0 %v1150
        %1224 = vmatpush.msra.mxu0 %v1148
        %1225 = vmatpush.msra.mxu0 %v1146
        %1226 = vmatpush.msra.mxu0 %v1144
        %1227 = vmatpush.msra.mxu0 %v1142
        %1228 = vmatpush.msra.mxu0 %v1140
        %1229 = vmatpush.msra.mxu0 %v1138
        %1230 = vmatpush.msra.mxu0 %v1136
        %1231 = vmatpush.msra.mxu0 %v1134
        %1232 = vmatpush.msra.mxu0 %v1132
        %1233 = vmatpush.msra.mxu0 %v1130
        %1234 = vmatpush.msra.mxu0 %v1128
        %1235 = vmatmul.f32.gmra.mxu0 %v693
        %v1236 = vpop.f32.mrf.mxu0
        %v1237 = vadd.f32 %v1217, %v1236
        %1238 = vdwg.mxu0
        %1239 = vrot.lane.b32.xlu0 %v1197, 13
        %v1240 = vpop.permute.xlu0 %1239
        %1241 = vrot.lane.b32.xlu0 %v1237, 13
        %v1242 = vpop.permute.xlu0 %1241
        %vm1243 = vcmp.lt.s32.totalorder %v703, 13
        %v1244 = vsel %vm1243, %v1240, %v1242
        %v1245 = vsel %vm1243, %v1242, %v1240
        %1246 = vrot.lane.b32.xlu0 %v1197, 12
        %v1247 = vpop.permute.xlu0 %1246
        %1248 = vrot.lane.b32.xlu0 %v1237, 12
        %v1249 = vpop.permute.xlu0 %1248
        %vm1250 = vcmp.lt.s32.totalorder %v703, 12
        %v1251 = vsel %vm1250, %v1247, %v1249
        %v1252 = vsel %vm1250, %v1249, %v1247
        %1253 = vrot.lane.b32.xlu0 %v1197, 11
        %v1254 = vpop.permute.xlu0 %1253
        %1255 = vrot.lane.b32.xlu0 %v1237, 11
        %v1256 = vpop.permute.xlu0 %1255
        %vm1257 = vcmp.lt.s32.totalorder %v703, 11
        %v1258 = vsel %vm1257, %v1254, %v1256
        %v1259 = vsel %vm1257, %v1256, %v1254
        %1260 = vrot.lane.b32.xlu0 %v1197, 1
        %v1261 = vpop.permute.xlu0 %1260
        %1262 = vrot.lane.b32.xlu0 %v1237, 1
        %v1263 = vpop.permute.xlu0 %1262
        %v1264 = vsel %vm725, %v1261, %v1263
        %v1265 = vsel %vm725, %v1263, %v1261
        %1266 = vrot.lane.b32.xlu0 %v1197, 127
        %v1267 = vpop.permute.xlu0 %1266
        %1268 = vrot.lane.b32.xlu0 %v1237, 127
        %v1269 = vpop.permute.xlu0 %1268
        %v1270 = vsel %vm732, %v1267, %v1269
        %v1271 = vsel %vm732, %v1269, %v1267
        %1272 = vrot.lane.b32.xlu0 %v1197, 117
        %v1273 = vpop.permute.xlu0 %1272
        %1274 = vrot.lane.b32.xlu0 %v1237, 117
        %v1275 = vpop.permute.xlu0 %1274
        %vm1276 = vcmp.lt.s32.totalorder %v703, 117
        %v1277 = vsel %vm1276, %v1273, %v1275
        %v1278 = vsel %vm1276, %v1275, %v1273
        %1279 = vrot.lane.b32.xlu0 %v1197, 116
        %v1280 = vpop.permute.xlu0 %1279
        %1281 = vrot.lane.b32.xlu0 %v1237, 116
        %v1282 = vpop.permute.xlu0 %1281
        %vm1283 = vcmp.lt.s32.totalorder %v703, 116
        %v1284 = vsel %vm1283, %v1280, %v1282
        %v1285 = vsel %vm1283, %v1282, %v1280
        %1286 = vrot.lane.b32.xlu0 %v1197, 115
        %v1287 = vpop.permute.xlu0 %1286
        %1288 = vrot.lane.b32.xlu0 %v1237, 115
        %v1289 = vpop.permute.xlu0 %1288
        %vm1290 = vcmp.lt.s32.totalorder %v703, 115
        %v1291 = vsel %vm1290, %v1287, %v1289
        %v1292 = vsel %vm1290, %v1289, %v1287
        %v1293 = vld [vmem:[#allocation13] sm:$0xff]
        %v1294 = vld [vmem:[#allocation13 + $0x8] sm:$0xff]
        %v1295 = vld [vmem:[#allocation13 + $0x10] sm:$0xff]
        %v1296 = vld [vmem:[#allocation13 + $0x18] sm:$0xff]
        %v1297 = vld [vmem:[#allocation13 + $0x20] sm:$0xff]
        %v1298 = vld [vmem:[#allocation13 + $0x28] sm:$0xff]
        %v1299 = vld [vmem:[#allocation13 + $0x30] sm:$0xff]
        %v1300 = vld [vmem:[#allocation13 + $0x38] sm:$0xff]
        %v1301 = vld [vmem:[#allocation13 + $0x40] sm:$0xff]
        %v1302 = vld [vmem:[#allocation13 + $0x48] sm:$0xff]
        %v1303 = vld [vmem:[#allocation13 + $0x50] sm:$0xff]
        %v1304 = vld [vmem:[#allocation13 + $0x58] sm:$0xff]
        %v1305 = vld [vmem:[#allocation13 + $0x60] sm:$0xff]
        %v1306 = vld [vmem:[#allocation13 + $0x68] sm:$0xff]
        %v1307 = vld [vmem:[#allocation13 + $0x70] sm:$0xff]
        %v1308 = vld [vmem:[#allocation13 + $0x78] sm:$0xff]
        %v1309 = vld [vmem:[#allocation13 + $0x80] sm:$0xff]
        %v1310 = vld [vmem:[#allocation13 + $0x88] sm:$0xff]
        %v1311 = vmul.f32 %v1245, %v1293
        %v1312 = vmul.f32 %v1244, %v1294
        %v1313 = vmul.f32 %v1252, %v1295
        %v1314 = vmul.f32 %v1251, %v1296
        %v1315 = vmul.f32 %v1259, %v1297
        %v1316 = vmul.f32 %v1258, %v1298
        %v1317 = vmul.f32 %v1265, %v1299
        %v1318 = vmul.f32 %v1264, %v1300
        %v1319 = vmul.f32 %v1197, %v1301
        %v1320 = vmul.f32 %v1237, %v1302
        %v1321 = vmul.f32 %v1270, %v1303
        %v1322 = vmul.f32 %v1271, %v1304
        %v1323 = vmul.f32 %v1277, %v1305
        %v1324 = vmul.f32 %v1278, %v1306
        %v1325 = vmul.f32 %v1284, %v1307
        %v1326 = vmul.f32 %v1285, %v1308
        %v1327 = vmul.f32 %v1291, %v1309
        %v1328 = vmul.f32 %v1292, %v1310
        %1329 = vmatpush.msra.mxu0 0.0
        %1330 = vmatpush.msra.mxu0 0.0
        %1331 = vmatpush.msra.mxu0 0.0
        %1332 = vmatpush.msra.mxu0 0.0
        %1333 = vmatpush.msra.mxu0 0.0
        %1334 = vmatpush.msra.mxu0 0.0
        %1335 = vmatpush.msra.mxu0 0.0
        %1336 = vmatpush.msra.mxu0 %v1327
        %1337 = vmatpush.msra.mxu0 %v1325
        %1338 = vmatpush.msra.mxu0 %v1323
        %1339 = vmatpush.msra.mxu0 %v1321
        %1340 = vmatpush.msra.mxu0 %v1319
        %1341 = vmatpush.msra.mxu0 %v1317
        %1342 = vmatpush.msra.mxu0 %v1315
        %1343 = vmatpush.msra.mxu0 %v1313
        %1344 = vmatpush.msra.mxu0 %v1311
        %1345 = vmatmul.f32.gmra.mxu0 %v804
        %v1346 = vpop.f32.mrf.mxu0
        %v1347 = vadd.f32 0.0, %v1346
        %1348 = vmatmul.f32.gmra.mxu0 %v807
        %v1349 = vpop.f32.mrf.mxu0
        %v1350 = vadd.f32 0.0, %v1349
        %1351 = vdwg.mxu0
        %1352 = vmatpush.msra.mxu0 0.0
        %1353 = vmatpush.msra.mxu0 0.0
        %1354 = vmatpush.msra.mxu0 0.0
        %1355 = vmatpush.msra.mxu0 0.0
        %1356 = vmatpush.msra.mxu0 0.0
        %1357 = vmatpush.msra.mxu0 0.0
        %1358 = vmatpush.msra.mxu0 0.0
        %1359 = vmatpush.msra.mxu0 %v1328
        %1360 = vmatpush.msra.mxu0 %v1326
        %1361 = vmatpush.msra.mxu0 %v1324
        %1362 = vmatpush.msra.mxu0 %v1322
        %1363 = vmatpush.msra.mxu0 %v1320
        %1364 = vmatpush.msra.mxu0 %v1318
        %1365 = vmatpush.msra.mxu0 %v1316
        %1366 = vmatpush.msra.mxu0 %v1314
        %1367 = vmatpush.msra.mxu0 %v1312
        %1368 = vmatmul.f32.gmra.mxu0 %v804
        %v1369 = vpop.f32.mrf.mxu0
        %v1370 = vadd.f32 0.0, %v1369
        %1371 = vmatmul.f32.gmra.mxu0 %v807
        %v1372 = vpop.f32.mrf.mxu0
        %v1373 = vadd.f32 0.0, %v1372
        %1374 = vdwg.mxu0
        %v1375 = vld [vmem:[#allocation12] sm:$0xff]
        %v1376 = vld [vmem:[#allocation12 + $0x8] sm:$0xff]
        %v1377 = vld [vmem:[#allocation12 + $0x10] sm:$0xff]
        %v1378 = vld [vmem:[#allocation12 + $0x18] sm:$0xff]
        %v1379 = vld [vmem:[#allocation12 + $0x20] sm:$0xff]
        %v1380 = vld [vmem:[#allocation12 + $0x28] sm:$0xff]
        %v1381 = vld [vmem:[#allocation12 + $0x30] sm:$0xff]
        %v1382 = vld [vmem:[#allocation12 + $0x38] sm:$0xff]
        %v1383 = vld [vmem:[#allocation12 + $0x40] sm:$0xff]
        %v1384 = vld [vmem:[#allocation12 + $0x48] sm:$0xff]
        %v1385 = vld [vmem:[#allocation12 + $0x50] sm:$0xff]
        %v1386 = vld [vmem:[#allocation12 + $0x58] sm:$0xff]
        %v1387 = vld [vmem:[#allocation12 + $0x60] sm:$0xff]
        %v1388 = vld [vmem:[#allocation12 + $0x68] sm:$0xff]
        %v1389 = vld [vmem:[#allocation12 + $0x70] sm:$0xff]
        %v1390 = vld [vmem:[#allocation12 + $0x78] sm:$0xff]
        %v1391 = vld [vmem:[#allocation12 + $0x80] sm:$0xff]
        %v1392 = vld [vmem:[#allocation12 + $0x88] sm:$0xff]
        %v1393 = vld [vmem:[#allocation12 + $0x90] sm:$0xff]
        %v1394 = vld [vmem:[#allocation12 + $0x98] sm:$0xff]
        %v1395 = vld [vmem:[#allocation12 + $0xa0] sm:$0xff]
        %v1396 = vld [vmem:[#allocation12 + $0xa8] sm:$0xff]
        %v1397 = vld [vmem:[#allocation12 + $0xb0] sm:$0xff]
        %v1398 = vld [vmem:[#allocation12 + $0xb8] sm:$0xff]
        %v1399 = vld [vmem:[#allocation12 + $0xc0] sm:$0xff]
        %v1400 = vld [vmem:[#allocation12 + $0xc8] sm:$0xff]
        %v1401 = vld [vmem:[#allocation12 + $0xd0] sm:$0xff]
        %v1402 = vld [vmem:[#allocation12 + $0xd8] sm:$0xff]
        %v1403 = vld [vmem:[#allocation12 + $0xe0] sm:$0xff]
        %v1404 = vld [vmem:[#allocation12 + $0xe8] sm:$0xff]
        %v1405 = vld [vmem:[#allocation12 + $0xf0] sm:$0xff]
        %v1406 = vld [vmem:[#allocation12 + $0xf8] sm:$0xff]
        %v1407 = vld [vmem:[#allocation12 + $0x100] sm:$0xff]
        %v1408 = vld [vmem:[#allocation12 + $0x108] sm:$0xff]
        %v1409 = vld [vmem:[#allocation12 + $0x110] sm:$0xff]
        %v1410 = vld [vmem:[#allocation12 + $0x118] sm:$0xff]
        %v1411 = vld [vmem:[#allocation12 + $0x120] sm:$0xff]
        %v1412 = vld [vmem:[#allocation12 + $0x128] sm:$0xff]
        %v1413 = vld [vmem:[#allocation12 + $0x130] sm:$0xff]
        %v1414 = vld [vmem:[#allocation12 + $0x138] sm:$0xff]
        %v1415 = vld [vmem:[#allocation12 + $0x140] sm:$0xff]
        %v1416 = vld [vmem:[#allocation12 + $0x148] sm:$0xff]
        %v1417 = vld [vmem:[#allocation12 + $0x150] sm:$0xff]
        %v1418 = vld [vmem:[#allocation12 + $0x158] sm:$0xff]
        %v1419 = vld [vmem:[#allocation12 + $0x160] sm:$0xff]
        %v1420 = vld [vmem:[#allocation12 + $0x168] sm:$0xff]
        %v1421 = vld [vmem:[#allocation12 + $0x170] sm:$0xff]
        %v1422 = vld [vmem:[#allocation12 + $0x178] sm:$0xff]
        %v1423 = vld [vmem:[#allocation12 + $0x180] sm:$0xff]
        %v1424 = vld [vmem:[#allocation12 + $0x188] sm:$0xff]
        %v1425 = vld [vmem:[#allocation12 + $0x190] sm:$0xff]
        %v1426 = vld [vmem:[#allocation12 + $0x198] sm:$0xff]
        %v1427 = vld [vmem:[#allocation12 + $0x1a0] sm:$0xff]
        %v1428 = vld [vmem:[#allocation12 + $0x1a8] sm:$0xff]
        %v1429 = vld [vmem:[#allocation12 + $0x1b0] sm:$0xff]
        %v1430 = vld [vmem:[#allocation12 + $0x1b8] sm:$0xff]
        %v1431 = vld [vmem:[#allocation12 + $0x1c0] sm:$0xff]
        %v1432 = vld [vmem:[#allocation12 + $0x1c8] sm:$0xff]
        %v1433 = vld [vmem:[#allocation12 + $0x1d0] sm:$0xff]
        %v1434 = vld [vmem:[#allocation12 + $0x1d8] sm:$0xff]
        %v1435 = vld [vmem:[#allocation12 + $0x1e0] sm:$0xff]
        %v1436 = vld [vmem:[#allocation12 + $0x1e8] sm:$0xff]
        %v1437 = vld [vmem:[#allocation12 + $0x1f0] sm:$0xff]
        %v1438 = vld [vmem:[#allocation12 + $0x1f8] sm:$0xff]
        %1439 = vmatpush.msra.mxu0 %v1405
        %1440 = vmatpush.msra.mxu0 %v1403
        %1441 = vmatpush.msra.mxu0 %v1401
        %1442 = vmatpush.msra.mxu0 %v1399
        %1443 = vmatpush.msra.mxu0 %v1397
        %1444 = vmatpush.msra.mxu0 %v1395
        %1445 = vmatpush.msra.mxu0 %v1393
        %1446 = vmatpush.msra.mxu0 %v1391
        %1447 = vmatpush.msra.mxu0 %v1389
        %1448 = vmatpush.msra.mxu0 %v1387
        %1449 = vmatpush.msra.mxu0 %v1385
        %1450 = vmatpush.msra.mxu0 %v1383
        %1451 = vmatpush.msra.mxu0 %v1381
        %1452 = vmatpush.msra.mxu0 %v1379
        %1453 = vmatpush.msra.mxu0 %v1377
        %1454 = vmatpush.msra.mxu0 %v1375
        %1455 = vmatmul.f32.gmra.mxu0 %v1347
        %v1456 = vpop.f32.mrf.mxu0
        %v1457 = vadd.f32 %v795, %v1456
        %1458 = vmatmul.f32.gmra.mxu0 %v1350
        %v1459 = vpop.f32.mrf.mxu0
        %v1460 = vadd.f32 %v800, %v1459
        %1461 = vdwg.mxu0
        %1462 = vmatpush.msra.mxu0 %v1437
        %1463 = vmatpush.msra.mxu0 %v1435
        %1464 = vmatpush.msra.mxu0 %v1433
        %1465 = vmatpush.msra.mxu0 %v1431
        %1466 = vmatpush.msra.mxu0 %v1429
        %1467 = vmatpush.msra.mxu0 %v1427
        %1468 = vmatpush.msra.mxu0 %v1425
        %1469 = vmatpush.msra.mxu0 %v1423
        %1470 = vmatpush.msra.mxu0 %v1421
        %1471 = vmatpush.msra.mxu0 %v1419
        %1472 = vmatpush.msra.mxu0 %v1417
        %1473 = vmatpush.msra.mxu0 %v1415
        %1474 = vmatpush.msra.mxu0 %v1413
        %1475 = vmatpush.msra.mxu0 %v1411
        %1476 = vmatpush.msra.mxu0 %v1409
        %1477 = vmatpush.msra.mxu0 %v1407
        %1478 = vmatmul.f32.gmra.mxu0 %v1370
        %v1479 = vpop.f32.mrf.mxu0
        %v1480 = vadd.f32 %v1457, %v1479
        %1481 = vmatmul.f32.gmra.mxu0 %v1373
        %v1482 = vpop.f32.mrf.mxu0
        %v1483 = vadd.f32 %v1460, %v1482
        %1484 = vdwg.mxu0
        %1485 = vmatpush.msra.mxu0 %v1406
        %1486 = vmatpush.msra.mxu0 %v1404
        %1487 = vmatpush.msra.mxu0 %v1402
        %1488 = vmatpush.msra.mxu0 %v1400
        %1489 = vmatpush.msra.mxu0 %v1398
        %1490 = vmatpush.msra.mxu0 %v1396
        %1491 = vmatpush.msra.mxu0 %v1394
        %1492 = vmatpush.msra.mxu0 %v1392
        %1493 = vmatpush.msra.mxu0 %v1390
        %1494 = vmatpush.msra.mxu0 %v1388
        %1495 = vmatpush.msra.mxu0 %v1386
        %1496 = vmatpush.msra.mxu0 %v1384
        %1497 = vmatpush.msra.mxu0 %v1382
        %1498 = vmatpush.msra.mxu0 %v1380
        %1499 = vmatpush.msra.mxu0 %v1378
        %1500 = vmatpush.msra.mxu0 %v1376
        %1501 = vmatmul.f32.gmra.mxu0 %v1347
        %v1502 = vpop.f32.mrf.mxu0
        %v1503 = vadd.f32 %v795, %v1502
        %1504 = vmatmul.f32.gmra.mxu0 %v1350
        %v1505 = vpop.f32.mrf.mxu0
        %v1506 = vadd.f32 %v800, %v1505
        %1507 = vdwg.mxu0
        %1508 = vmatpush.msra.mxu0 %v1438
        %1509 = vmatpush.msra.mxu0 %v1436
        %1510 = vmatpush.msra.mxu0 %v1434
        %1511 = vmatpush.msra.mxu0 %v1432
        %1512 = vmatpush.msra.mxu0 %v1430
        %1513 = vmatpush.msra.mxu0 %v1428
        %1514 = vmatpush.msra.mxu0 %v1426
        %1515 = vmatpush.msra.mxu0 %v1424
        %1516 = vmatpush.msra.mxu0 %v1422
        %1517 = vmatpush.msra.mxu0 %v1420
        %1518 = vmatpush.msra.mxu0 %v1418
        %1519 = vmatpush.msra.mxu0 %v1416
        %1520 = vmatpush.msra.mxu0 %v1414
        %1521 = vmatpush.msra.mxu0 %v1412
        %1522 = vmatpush.msra.mxu0 %v1410
        %1523 = vmatpush.msra.mxu0 %v1408
        %1524 = vmatmul.f32.gmra.mxu0 %v1370
        %v1525 = vpop.f32.mrf.mxu0
        %v1526 = vadd.f32 %v1503, %v1525
        %1527 = vmatmul.f32.gmra.mxu0 %v1373
        %v1528 = vpop.f32.mrf.mxu0
        %v1529 = vadd.f32 %v1506, %v1528
        %1530 = vdwg.mxu0
        %1531 = vst [vmem:[%s686] sm:$0x3f] %v1480
        %1532 = vst [vmem:[%s686 + $0x8] sm:$0x3f] %v1526
        %v1537 = vrot.slane %v1480, 6
        %v1538 = vrot.slane %v1483, 6
        %v1539 = vsel %vm861, %v1537, %v1538
        %v1540 = vrot.slane %v1526, 6
        %v1541 = vrot.slane %v1529, 6
        %v1542 = vsel %vm861, %v1540, %v1541
        %1545 = vst [vmem:[%s691] sm:$0x3f] %v1539
        %1546 = vst [vmem:[%s691 + $0x8] sm:$0x3f] %v1542
        %p1547 = scmp.lt.s32.totalorder %s34, 1
        %s1548 = scalar_select %p1547, %s34, 1
        %s1549 = smul.addr %s1548, 2
        %s1550 = smul.addr %s1549, 8
        %s1551 = scalar_lea.vmem %s10, %s1550
        %p1552 = scmp.lt.s32.totalorder %s34, 1
        %s1553 = scalar_select %p1552, %s34, 1
        %s1554 = smul.addr %s1553, 2
        %s1555 = smul.addr %s1554, 8
        %s1556 = scalar_lea.vmem %s11, %s1555
        %p1557 = scmp.lt.s32.totalorder %s34, 1
        %s1558 = scalar_select %p1557, %s34, 1
        %s1559 = smul.addr %s1558, 2
        %s1560 = smul.addr %s1559, 8
        %s1561 = scalar_lea.vmem %s12, %s1560
        %p1562 = scmp.lt.s32.totalorder %s34, 1
        %s1563 = scalar_select %p1562, %s34, 1
        %s1564 = smul.addr %s1563, 2
        %s1565 = smul.addr %s1564, 8
        %s1566 = scalar_lea.vmem %s13, %s1565
        %p1567 = scmp.lt.s32.totalorder %s34, 1
        %s1568 = scalar_select %p1567, %s34, 1
        %s1569 = smul.addr %s1568, 2
        %s1570 = smul.addr %s1569, 8
        %s1571 = scalar_lea.vmem %s14, %s1570
        %p1572 = scmp.lt.s32.totalorder %s34, 1
        %s1573 = scalar_select %p1572, %s34, 1
        %s1574 = smul.addr %s1573, 2
        %s1575 = smul.addr %s1574, 8
        %s1576 = scalar_lea.vmem %s15, %s1575
        // Predicated region
        $region93: #{tpu_custom_call.1} parent=59 // pred_check
          %p1577 = pneg %p267
        $region94: #{tpu_custom_call.1} parent=59 // pred_check_branch
          %1579 = sbr.rel (%p1577) target = $region96
        $region95: #{tpu_custom_call.1} parent=59 // pred_region
          _
        $region96: #{tpu_custom_call.1} parent=59 // pred_fallthru
          _
        // Predicated region
        $region97: #{tpu_custom_call.1} parent=59 // pred_check
          %p1580 = pneg %p293
        $region98: #{tpu_custom_call.1} parent=59 // pred_check_branch
          %1582 = sbr.rel (%p1580) target = $region100
        $region99: #{tpu_custom_call.1} parent=59 // pred_region
          _
        $region100: #{tpu_custom_call.1} parent=59 // pred_fallthru
          _
        // Predicated region
        $region101: #{tpu_custom_call.1} parent=59 // pred_check
          %p1583 = pneg %p319
        $region102: #{tpu_custom_call.1} parent=59 // pred_check_branch
          %1585 = sbr.rel (%p1583) target = $region104
        $region103: #{tpu_custom_call.1} parent=59 // pred_region
          _
        $region104: #{tpu_custom_call.1} parent=59 // pred_fallthru
          _
        // Predicated region
        $region105: #{tpu_custom_call.1} parent=59 // pred_check
          %p1586 = pneg %p345
        $region106: #{tpu_custom_call.1} parent=59 // pred_check_branch
          %1588 = sbr.rel (%p1586) target = $region108
        $region107: #{tpu_custom_call.1} parent=59 // pred_region
          _
        $region108: #{tpu_custom_call.1} parent=59 // pred_fallthru
          _
        // Predicated region
        $region109: #{tpu_custom_call.1} parent=59 // pred_check
          %p1589 = pneg %p371
        $region110: #{tpu_custom_call.1} parent=59 // pred_check_branch
          %1591 = sbr.rel (%p1589) target = $region112
        $region111: #{tpu_custom_call.1} parent=59 // pred_region
          _
        $region112: #{tpu_custom_call.1} parent=59 // pred_fallthru
          _
        // Predicated region
        $region113: #{tpu_custom_call.1} parent=59 // pred_check
          %p1592 = pneg %p397
        $region114: #{tpu_custom_call.1} parent=59 // pred_check_branch
          %1594 = sbr.rel (%p1592) target = $region116
        $region115: #{tpu_custom_call.1} parent=59 // pred_region
          _
        $region116: #{tpu_custom_call.1} parent=59 // pred_fallthru
          _
      $region60: #{tpu_custom_call.1} parent=5 // pred_fallthru
        _
      %p1595 = scmp.le.s32.totalorder 2, %s29
      // Predicated region
      $region117: #{tpu_custom_call.1} parent=5 // pred_check
        %p1596 = pneg %p1595
      $region118: #{tpu_custom_call.1} parent=5 // pred_check_branch
        %1598 = sbr.rel (%p1596) target = $region120
      $region119: #{tpu_custom_call.1} parent=5 // pred_region
        %s1599 = ssub.s32 %s29, 2
        // Predicated region
        $region121: #{tpu_custom_call.1} parent=119 // pred_check
          %p1600 = pneg %p273
        $region122: #{tpu_custom_call.1} parent=119 // pred_check_branch
          %1602 = sbr.rel (%p1600) target = $region124
        $region123: #{tpu_custom_call.1} parent=119 // pred_region
          %p1603 = scmp.lt.s32.totalorder %s35, 1
          %s1604 = scalar_select %p1603, %s35, 1
          %s1605 = smul.addr %s1604, 2
          %s1606 = smul.addr %s1605, 8
          %s1607 = scalar_lea.vmem %s10, %s1606
        $region124: #{tpu_custom_call.1} parent=119 // pred_fallthru
          _
        // Predicated region
        $region125: #{tpu_custom_call.1} parent=119 // pred_check
          %p1608 = pneg %p299
        $region126: #{tpu_custom_call.1} parent=119 // pred_check_branch
          %1610 = sbr.rel (%p1608) target = $region128
        $region127: #{tpu_custom_call.1} parent=119 // pred_region
          %p1611 = scmp.lt.s32.totalorder %s35, 1
          %s1612 = scalar_select %p1611, %s35, 1
          %s1613 = smul.addr %s1612, 2
          %s1614 = smul.addr %s1613, 8
          %s1615 = scalar_lea.vmem %s11, %s1614
        $region128: #{tpu_custom_call.1} parent=119 // pred_fallthru
          _
        // Predicated region
        $region129: #{tpu_custom_call.1} parent=119 // pred_check
          %p1616 = pneg %p325
        $region130: #{tpu_custom_call.1} parent=119 // pred_check_branch
          %1618 = sbr.rel (%p1616) target = $region132
        $region131: #{tpu_custom_call.1} parent=119 // pred_region
          %p1619 = scmp.lt.s32.totalorder %s35, 1
          %s1620 = scalar_select %p1619, %s35, 1
          %s1621 = smul.addr %s1620, 2
          %s1622 = smul.addr %s1621, 8
          %s1623 = scalar_lea.vmem %s12, %s1622
        $region132: #{tpu_custom_call.1} parent=119 // pred_fallthru
          _
        // Predicated region
        $region133: #{tpu_custom_call.1} parent=119 // pred_check
          %p1624 = pneg %p351
        $region134: #{tpu_custom_call.1} parent=119 // pred_check_branch
          %1626 = sbr.rel (%p1624) target = $region136
        $region135: #{tpu_custom_call.1} parent=119 // pred_region
          %p1627 = scmp.lt.s32.totalorder %s35, 1
          %s1628 = scalar_select %p1627, %s35, 1
          %s1629 = smul.addr %s1628, 2
          %s1630 = smul.addr %s1629, 8
          %s1631 = scalar_lea.vmem %s13, %s1630
        $region136: #{tpu_custom_call.1} parent=119 // pred_fallthru
          _
        // Predicated region
        $region137: #{tpu_custom_call.1} parent=119 // pred_check
          %p1632 = pneg %p377
        $region138: #{tpu_custom_call.1} parent=119 // pred_check_branch
          %1634 = sbr.rel (%p1632) target = $region140
        $region139: #{tpu_custom_call.1} parent=119 // pred_region
          %p1635 = scmp.lt.s32.totalorder %s35, 1
          %s1636 = scalar_select %p1635, %s35, 1
          %s1637 = smul.addr %s1636, 2
          %s1638 = smul.addr %s1637, 8
          %s1639 = scalar_lea.vmem %s14, %s1638
        $region140: #{tpu_custom_call.1} parent=119 // pred_fallthru
          _
        // Predicated region
        $region141: #{tpu_custom_call.1} parent=119 // pred_check
          %p1640 = pneg %p403
        $region142: #{tpu_custom_call.1} parent=119 // pred_check_branch
          %1642 = sbr.rel (%p1640) target = $region144
        $region143: #{tpu_custom_call.1} parent=119 // pred_region
          %p1643 = scmp.lt.s32.totalorder %s35, 1
          %s1644 = scalar_select %p1643, %s35, 1
          %s1645 = smul.addr %s1644, 2
          %s1646 = smul.addr %s1645, 8
          %s1647 = scalar_lea.vmem %s15, %s1646
        $region144: #{tpu_custom_call.1} parent=119 // pred_fallthru
          _
      $region120: #{tpu_custom_call.1} parent=5 // pred_fallthru
        _
    $region6: #{tpu_custom_call.1} parent=1 // loop_footer
      %s33 = sadd.s32 1, %s29
    $region7: #{tpu_custom_call.1} parent=1 // loop_footer_branch
      %28 = sbr.rel target = $region3
    $region8: #{tpu_custom_call.1} parent=1 // loop_exit
      _
    %1648 = vsyncpa [#allocation3], 1
    %s1649 = scalar_lea.sflag [#allocation3], 1
    %1650 = vsyncpa %s1649, 1
    %1651 = vsyncpa [#allocation5], 1
    %1652 = vsyncpa [#allocation8], 1
    %1653 = vsyncpa [#allocation11], 1
    %1654 = vsyncpa [#allocation14], 1

</llo_original>
